<compile_context>
chip_gen: v6e
topology: v6e:2x2x1
jax: 0.10.0
libtpu: 0.0.40
codegen_flags: <defaults>
</compile_context>

<pallas_src>
import functools

import jax
import jax.numpy as jnp
from jax.experimental import pallas as pl
from jax.experimental.pallas import tpu as pltpu

_EPS = 1e-5
_MXU_DTYPE = jnp.bfloat16            # MXU operand dtype (accumulate in f32)
_VMEM_LIMIT = 32 * 1024 * 1024       # explicit scoped-VMEM budget (fits v7x 64 MiB)


def _relu(x):
    return jnp.maximum(x, 0.0)


def _mxu(w, x):
    """MXU matmul with bf16 operands and f32 accumulation."""
    return jnp.dot(w.astype(_MXU_DTYPE), x.astype(_MXU_DTYPE),
                   preferred_element_type=jnp.float32)


def _conv3_fused(a, w_cat, bias):
    """3-tap 'same' Conv1d along lanes as a single K=3*C4 MXU matmul.

    a:     (C4, L)  activations (channels on sublanes, length on lanes)
    w_cat: (C4, 3*C4) column blocks [tap(l-1) | tap(l) | tap(l+1)]
    bias:  (C4, 1)
    """
    _, L = a.shape
    lane = jax.lax.broadcasted_iota(jnp.int32, a.shape, 1)
    left = jnp.where(lane == 0, 0.0, pltpu.roll(a, 1, 1))            # a[:, l-1]
    right = jnp.where(lane == L - 1, 0.0, pltpu.roll(a, L - 1, 1))   # a[:, l+1]
    a_cat = jnp.concatenate([left, a, right], axis=0)                # (3*C4, L)
    return _mxu(w_cat, a_cat) + bias


# --------------------------- phase 1: BN statistics --------------------------
def _stats_kernel(*refs, k, count):
    """Sequential 3-pass sweep producing folded BN (scale, shift) for bn1/2/3.

    grid = (3, N); pass p accumulates per-channel sum / sum-of-squares of
    Hs (p=0), h1 (p=1), h2 (p=2) into VMEM scratch; the last batch step of each
    pass folds gamma/beta/mean/var into (scale, shift) in the resident output
    block, which later passes read straight back from VMEM.
    """
    x_refs = refs[:k]
    (g1_ref, be1_ref, w1_ref, b1_ref,
     g2_ref, be2_ref, w2_ref, b2_ref,
     g3_ref, be3_ref,
     bn1_ref, bn2_ref, bn3_ref,
     acc_c_ref, acc_c4_ref) = refs[k:]

    p = pl.program_id(0)
    b = pl.program_id(1)
    last = b == pl.num_programs(1) - 1
    inv_count = 1.0 / count

    # Channel concat of the k inputs: in-VMEM sublane concat, no HBM relayout.
    hs = jnp.concatenate([x_ref[...] for x_ref in x_refs], axis=0)   # (C, L)

    @pl.when(b == 0)
    def _reset_acc():
        acc_c_ref[...] = jnp.zeros_like(acc_c_ref)
        acc_c4_ref[...] = jnp.zeros_like(acc_c4_ref)

    def accumulate(acc_ref, v):
        acc_ref[:, 0:1] += jnp.sum(v, axis=1, keepdims=True)
        acc_ref[:, 1:2] += jnp.sum(v * v, axis=1, keepdims=True)

    def finalize(acc_ref, g_ref, be_ref, bn_ref):
        mean = acc_ref[:, 0:1] * inv_count
        var = acc_ref[:, 1:2] * inv_count - mean * mean              # biased var
        scale = g_ref[...] * jax.lax.rsqrt(var + _EPS)
        bn_ref[:, 0:1] = scale
        bn_ref[:, 1:2] = be_ref[...] - mean * scale

    def compute_h1():
        a1 = _relu(hs * bn1_ref[:, 0:1] + bn1_ref[:, 1:2])
        return _mxu(w1_ref[...], a1) + b1_ref[...]                   # (C4, L)

    @pl.when(p == 0)
    def _pass0():
        accumulate(acc_c_ref, hs)

    @pl.when(jnp.logical_and(p == 0, last))
    def _fold1():
        finalize(acc_c_ref, g1_ref, be1_ref, bn1_ref)

    @pl.when(p == 1)
    def _pass1():
        accumulate(acc_c4_ref, compute_h1())

    @pl.when(jnp.logical_and(p == 1, last))
    def _fold2():
        finalize(acc_c4_ref, g2_ref, be2_ref, bn2_ref)

    @pl.when(p == 2)
    def _pass2():
        h1 = compute_h1()
        a2 = _relu(h1 * bn2_ref[:, 0:1] + bn2_ref[:, 1:2])
        accumulate(acc_c4_ref, _conv3_fused(a2, w2_ref[...], b2_ref[...]))

    @pl.when(jnp.logical_and(p == 2, last))
    def _fold3():
        finalize(acc_c4_ref, g3_ref, be3_ref, bn3_ref)


# ----------------------------- phase 2: fused apply ---------------------------
def _apply_kernel(*refs, k):
    """BN1+ReLU+conv1x1 -> BN2+ReLU+conv3(fused) -> BN3+ReLU+conv1x1 -> +2*Hs."""
    x_refs = refs[:k]
    (bn1_ref, bn2_ref, bn3_ref,
     w1_ref, b1_ref, w2_ref, b2_ref, w3_ref, b3_ref,
     out_ref) = refs[k:]

    hs = jnp.concatenate([x_ref[...] for x_ref in x_refs], axis=0)   # (C, L)
    a1 = _relu(hs * bn1_ref[:, 0:1] + bn1_ref[:, 1:2])
    h1 = _mxu(w1_ref[...], a1) + b1_ref[...]                         # (C4, L)
    a2 = _relu(h1 * bn2_ref[:, 0:1] + bn2_ref[:, 1:2])
    h2 = _conv3_fused(a2, w2_ref[...], b2_ref[...])                  # (C4, L)
    a3 = _relu(h2 * bn3_ref[:, 0:1] + bn3_ref[:, 1:2])
    h3 = _mxu(w3_ref[...], a3) + b3_ref[...]                         # (C, L)
    # DRBlock: Hs + bottleneck(Hs) = Hs + (h3 + Hs)
    out_ref[...] = h3 + 2.0 * hs


# --------------------------------- wrapper ------------------------------------
def prepare_params(torch_params):
    """PyTorch-layout Bottleneck('DOWN') params -> kernel layout.

    1x1 conv weights lose the trailing kernel dim; conv2's 3 taps are packed
    side by side as (C4, 3*C4); per-channel vectors become (C, 1) columns so
    they broadcast along the lane (L) axis inside the kernels.
    """
    (w1, b1, w2, b2, w3, b3, g1, be1, g2, be2, g3, be3) = torch_params
    c4, c, _ = w1.shape
    col = lambda v: jnp.asarray(v, jnp.float32).reshape(-1, 1)
    w1k = jnp.asarray(w1, jnp.float32).reshape(c4, c)                 # (C4, C)
    w2k = jnp.concatenate([jnp.asarray(w2[:, :, t], jnp.float32)
                           for t in range(3)], axis=1)                # (C4, 3*C4)
    w3k = jnp.asarray(w3, jnp.float32).reshape(c, c4)                 # (C, C4)
    return (col(g1), col(be1), w1k, col(b1),
            col(g2), col(be2), w2k, col(b2),
            col(g3), col(be3), w3k, col(b3))


def drblock_forward(tensor_list, kernel_params):
    """DRBlock: out = Hs + Bottleneck_DOWN(Hs),  Hs = cat(tensor_list, dim=1).

    Inputs stay in PyTorch (N, C_i, L) layout; output is (N, C, L).
    """
    k = len(tensor_list)
    xs = [jnp.asarray(t, jnp.float32) for t in tensor_list]
    n, _, L = xs[0].shape
    cis = [int(x.shape[1]) for x in xs]
    C = sum(cis)
    C4 = C // 4
    (g1, be1, w1, b1, g2, be2, w2, b2, g3, be3, w3, b3) = kernel_params

    def x_specs(rank):
        # One batch element per grid step; channel/length dims are full blocks.
        if rank == 2:
            return [pl.BlockSpec((None, ci, L), lambda p, b: (b, 0, 0)) for ci in cis]
        return [pl.BlockSpec((None, ci, L), lambda b: (b, 0, 0)) for ci in cis]

    def const_spec(arr, rank):
        # Constant index map => parameter block stays resident in VMEM.
        shp = tuple(arr.shape)
        if rank == 2:
            return pl.BlockSpec(shp, lambda p, b, _s=shp: (0,) * len(_s))
        return pl.BlockSpec(shp, lambda b, _s=shp: (0,) * len(_s))

    # ---- phase 1: BN statistics sweep (sequential 3-pass reduction) ----
    stats_params = (g1, be1, w1, b1, g2, be2, w2, b2, g3, be3)
    bn1f, bn2f, bn3f = pl.pallas_call(
        functools.partial(_stats_kernel, k=k, count=float(n * L)),
        grid=(3, n),
        in_specs=x_specs(2) + [const_spec(a, 2) for a in stats_params],
        out_specs=(pl.BlockSpec((C, 2), lambda p, b: (0, 0)),
                   pl.BlockSpec((C4, 2), lambda p, b: (0, 0)),
                   pl.BlockSpec((C4, 2), lambda p, b: (0, 0))),
        out_shape=(jax.ShapeDtypeStruct((C, 2), jnp.float32),
                   jax.ShapeDtypeStruct((C4, 2), jnp.float32),
                   jax.ShapeDtypeStruct((C4, 2), jnp.float32)),
        scratch_shapes=[pltpu.VMEM((C, 2), jnp.float32),
                        pltpu.VMEM((C4, 2), jnp.float32)],
        compiler_params=pltpu.CompilerParams(
            dimension_semantics=("arbitrary", "arbitrary"),
            vmem_limit_bytes=_VMEM_LIMIT),
    )(*xs, *stats_params)

    # ---- phase 2: fused apply, one batch element per grid step ----
    apply_params = (bn1f, bn2f, bn3f, w1, b1, w2, b2, w3, b3)
    out = pl.pallas_call(
        functools.partial(_apply_kernel, k=k),
        grid=(n,),
        in_specs=x_specs(1) + [const_spec(a, 1) for a in apply_params],
        out_specs=pl.BlockSpec((None, C, L), lambda b: (b, 0, 0)),
        out_shape=jax.ShapeDtypeStruct((n, C, L), jnp.float32),
        compiler_params=pltpu.CompilerParams(
            dimension_semantics=("parallel",),          # megacore split
            vmem_limit_bytes=_VMEM_LIMIT),
    )(*xs, *apply_params)
    return out


# ----------------------- pure-JAX f32 reference (for checking) ----------------
def _conv1d_same_ref(x, w, b):
    """PyTorch Conv1d, 'same' zero padding, cross-correlation. x: (N, C, L)."""
    ksz = w.shape[2]
    pad = ksz // 2
    L = x.shape[2]
    xp = jnp.pad(x, ((0, 0), (0, 0), (pad, pad)))
    y = sum(jnp.einsum('ncl,oc->nol', xp[:, :, t:t + L], w[:, :, t])
            for t in range(ksz))
    return y + b[None, :, None]


def _bn_relu_ref(x, g, be):
    mean = jnp.mean(x, axis=(0, 2), keepdims=True)
    var = jnp.mean(jnp.square(x - mean), axis=(0, 2), keepdims=True)
    y = (x - mean) * jax.lax.rsqrt(var + _EPS) * g[None, :, None] + be[None, :, None]
    return jnp.maximum(y, 0.0)


def drblock_reference(tensor_list, torch_params):
    (w1, b1, w2, b2, w3, b3, g1, be1, g2, be2, g3, be3) = torch_params
    hs = jnp.concatenate([jnp.asarray(t, jnp.float32) for t in tensor_list], axis=1)
    x = _conv1d_same_ref(_bn_relu_ref(hs, g1, be1), w1, b1)
    x = _conv1d_same_ref(_bn_relu_ref(x, g2, be2), w2, b2)
    x = _conv1d_same_ref(_bn_relu_ref(x, g3, be3), w3, b3)
    return hs + (x + hs)


def init_torch_params(key, in_chans):
    """Freshly initialized Bottleneck(mode='DOWN') params in PyTorch layout."""
    C = in_chans
    C4 = C // 4
    k1, k2, k3 = jax.random.split(key, 3)

    def xavier(kk, shape):  # shape = (C_out, C_in, ksize)
        fan_out = shape[0] * shape[2]
        fan_in = shape[1] * shape[2]
        bound = (6.0 / (fan_in + fan_out)) ** 0.5
        return jax.random.uniform(kk, shape, jnp.float32, -bound, bound)

    w1 = xavier(k1, (C4, C, 1));  b1 = jnp.zeros((C4,), jnp.float32)
    w2 = xavier(k2, (C4, C4, 3)); b2 = jnp.zeros((C4,), jnp.float32)
    w3 = xavier(k3, (C, C4, 1));  b3 = jnp.zeros((C,), jnp.float32)
    g1, be1 = jnp.ones((C,), jnp.float32), jnp.zeros((C,), jnp.float32)
    g2, be2 = jnp.ones((C4,), jnp.float32), jnp.zeros((C4,), jnp.float32)
    g3, be3 = jnp.ones((C4,), jnp.float32), jnp.zeros((C4,), jnp.float32)
    return (w1, b1, w2, b2, w3, b3, g1, be1, g2, be2, g3, be3)


if __name__ == "__main__":
    # DRBlock(in_chans=16, k=2): tensor_list of k=2 tensors with 8 channels each.
    in_chans, k = 16, 2
    N, L = 2, 128          # L=128 keeps the length axis lane-dense

    key = jax.random.PRNGKey(0)
    kx0, kx1, kp = jax.random.split(key, 3)
    t0 = jax.random.normal(kx0, (N, in_chans // k, L), jnp.float32)
    t1 = jax.random.normal(kx1, (N, in_chans // k, L), jnp.float32)

    torch_params = init_torch_params(kp, in_chans)
    kernel_params = prepare_params(torch_params)

    out = drblock_forward([t0, t1], kernel_params)
    out = jax.block_until_ready(out)
    assert out.shape == (N, in_chans, L), out.shape

    # Cross-check against a pure-JAX f32 reference (bf16 MXU operands => loose tol).
    ref = drblock_reference([t0, t1], torch_params)
    rel_err = float(jnp.max(jnp.abs(out - ref)) / (jnp.max(jnp.abs(ref)) + 1e-6))
    assert rel_err < 5e-2, f"kernel/reference mismatch: rel_err={rel_err:.3e}"
    print("KERNEL_OK")
</pallas_src>

<mosaic_0001>
module attributes {stable_mosaic.version = 11 : i64} {
  func.func @_stats_kernel(%arg0: i32, %arg1: i32, %arg2: memref<1x8x128xf32, #tpu.memory_space<vmem>>, %arg3: memref<1x8x128xf32, #tpu.memory_space<vmem>>, %arg4: memref<16x1xf32, #tpu.memory_space<vmem>>, %arg5: memref<16x1xf32, #tpu.memory_space<vmem>>, %arg6: memref<4x16xf32, #tpu.memory_space<vmem>>, %arg7: memref<4x1xf32, #tpu.memory_space<vmem>>, %arg8: memref<4x1xf32, #tpu.memory_space<vmem>>, %arg9: memref<4x1xf32, #tpu.memory_space<vmem>>, %arg10: memref<4x12xf32, #tpu.memory_space<vmem>>, %arg11: memref<4x1xf32, #tpu.memory_space<vmem>>, %arg12: memref<4x1xf32, #tpu.memory_space<vmem>>, %arg13: memref<4x1xf32, #tpu.memory_space<vmem>>, %arg14: memref<16x2xf32, #tpu.memory_space<vmem>>, %arg15: memref<4x2xf32, #tpu.memory_space<vmem>>, %arg16: memref<4x2xf32, #tpu.memory_space<vmem>>, %arg17: memref<16x2xf32, #tpu.memory_space<vmem>>, %arg18: memref<4x2xf32, #tpu.memory_space<vmem>>) attributes {dimension_semantics = [#tpu.dimension_semantics<arbitrary>, #tpu.dimension_semantics<arbitrary>], iteration_bounds = array<i64: 3, 2>, scalar_prefetch = 0 : i64, scratch_operands = 2 : i64, tpu.core_type = #tpu.core_type<tc>, window_params = [{transform_indices = @transform_0, window_bounds = array<i64: 1, 8, 128>}, {transform_indices = @transform_1, window_bounds = array<i64: 1, 8, 128>}, {pipeline_mode = #tpu.pipeline_mode<synchronous>, transform_indices = @transform_2, window_bounds = array<i64: 16, 1>}, {pipeline_mode = #tpu.pipeline_mode<synchronous>, transform_indices = @transform_3, window_bounds = array<i64: 16, 1>}, {pipeline_mode = #tpu.pipeline_mode<synchronous>, transform_indices = @transform_4, window_bounds = array<i64: 4, 16>}, {pipeline_mode = #tpu.pipeline_mode<synchronous>, transform_indices = @transform_5, window_bounds = array<i64: 4, 1>}, {pipeline_mode = #tpu.pipeline_mode<synchronous>, transform_indices = @transform_6, window_bounds = array<i64: 4, 1>}, {pipeline_mode = #tpu.pipeline_mode<synchronous>, transform_indices = @transform_7, window_bounds = array<i64: 4, 1>}, {pipeline_mode = #tpu.pipeline_mode<synchronous>, transform_indices = @transform_8, window_bounds = array<i64: 4, 12>}, {pipeline_mode = #tpu.pipeline_mode<synchronous>, transform_indices = @transform_9, window_bounds = array<i64: 4, 1>}, {pipeline_mode = #tpu.pipeline_mode<synchronous>, transform_indices = @transform_10, window_bounds = array<i64: 4, 1>}, {pipeline_mode = #tpu.pipeline_mode<synchronous>, transform_indices = @transform_11, window_bounds = array<i64: 4, 1>}, {pipeline_mode = #tpu.pipeline_mode<synchronous>, transform_indices = @transform_12, window_bounds = array<i64: 16, 2>}, {pipeline_mode = #tpu.pipeline_mode<synchronous>, transform_indices = @transform_13, window_bounds = array<i64: 4, 2>}, {pipeline_mode = #tpu.pipeline_mode<synchronous>, transform_indices = @transform_14, window_bounds = array<i64: 4, 2>}]} {
    %c1_i32 = arith.constant 1 : i32
    %0 = arith.cmpi eq, %arg1, %c1_i32 : i32
    %c0 = arith.constant 0 : index
    %c0_0 = arith.constant 0 : index
    %c0_1 = arith.constant 0 : index
    %1 = vector.load %arg2[%c0, %c0_0, %c0_1] : memref<1x8x128xf32, #tpu.memory_space<vmem>>, vector<1x8x128xf32>
    %2 = vector.shape_cast %1 : vector<1x8x128xf32> to vector<8x128xf32>
    %c0_2 = arith.constant 0 : index
    %c0_3 = arith.constant 0 : index
    %c0_4 = arith.constant 0 : index
    %3 = vector.load %arg3[%c0_2, %c0_3, %c0_4] : memref<1x8x128xf32, #tpu.memory_space<vmem>>, vector<1x8x128xf32>
    %4 = vector.shape_cast %3 : vector<1x8x128xf32> to vector<8x128xf32>
    %5 = tpu.concatenate %2, %4 in 0 : vector<8x128xf32>, vector<8x128xf32> -> vector<16x128xf32>
    %c0_i32 = arith.constant 0 : i32
    %6 = arith.cmpi eq, %arg1, %c0_i32 : i32
    %7 = arith.extui %6 : i1 to i32
    %c0_i32_5 = arith.constant 0 : i32
    %8 = arith.cmpi ne, %7, %c0_i32_5 : i32
    scf.if %8 {
      %cst = arith.constant 0.000000e+00 : f32
      %30 = vector.broadcast %cst : f32 to vector<16x2xf32>
      %c0_17 = arith.constant 0 : index
      %c0_18 = arith.constant 0 : index
      %31 = vector.load %arg17[%c0_17, %c0_18] : memref<16x2xf32, #tpu.memory_space<vmem>>, vector<16x2xf32>
      tpu.vector_store %arg17[%c0_17, %c0_18], %30 {strides = array<i32>} : memref<16x2xf32, #tpu.memory_space<vmem>>, vector<16x2xf32>,
      %cst_19 = arith.constant 0.000000e+00 : f32
      %32 = vector.broadcast %cst_19 : f32 to vector<4x2xf32>
      %c0_20 = arith.constant 0 : index
      %c0_21 = arith.constant 0 : index
      %33 = vector.load %arg18[%c0_20, %c0_21] : memref<4x2xf32, #tpu.memory_space<vmem>>, vector<4x2xf32>
      tpu.vector_store %arg18[%c0_20, %c0_21], %32 {strides = array<i32>} : memref<4x2xf32, #tpu.memory_space<vmem>>, vector<4x2xf32>,
    } else {
    }
    %c0_i32_6 = arith.constant 0 : i32
    %9 = arith.cmpi eq, %arg0, %c0_i32_6 : i32
    %10 = arith.extui %9 : i1 to i32
    %c0_i32_7 = arith.constant 0 : i32
    %11 = arith.cmpi ne, %10, %c0_i32_7 : i32
    scf.if %11 {
      %c0_17 = arith.constant 0 : index
      %c0_18 = arith.constant 0 : index
      %30 = vector.load %arg17[%c0_17, %c0_18] : memref<16x2xf32, #tpu.memory_space<vmem>>, vector<16x1xf32>
      %cst = arith.constant dense<0.000000e+00> : vector<16xf32>
      %31 = vector.multi_reduction <add>, %5, %cst [1] : vector<16x128xf32> to vector<16xf32>
      %32 = vector.shape_cast %31 : vector<16xf32> to vector<16x1xf32>
      %33 = arith.addf %30, %32 : vector<16x1xf32>
      %c0_19 = arith.constant 0 : index
      %c0_20 = arith.constant 0 : index
      %34 = vector.load %arg17[%c0_19, %c0_20] : memref<16x2xf32, #tpu.memory_space<vmem>>, vector<16x1xf32>
      tpu.vector_store %arg17[%c0_19, %c0_20], %33 {strides = array<i32>} : memref<16x2xf32, #tpu.memory_space<vmem>>, vector<16x1xf32>,
      %c0_21 = arith.constant 0 : index
      %c1 = arith.constant 1 : index
      %35 = vector.load %arg17[%c0_21, %c1] : memref<16x2xf32, #tpu.memory_space<vmem>>, vector<16x1xf32>
      %36 = arith.mulf %5, %5 : vector<16x128xf32>
      %cst_22 = arith.constant dense<0.000000e+00> : vector<16xf32>
      %37 = vector.multi_reduction <add>, %36, %cst_22 [1] : vector<16x128xf32> to vector<16xf32>
      %38 = vector.shape_cast %37 : vector<16xf32> to vector<16x1xf32>
      %39 = arith.addf %35, %38 : vector<16x1xf32>
      %c0_23 = arith.constant 0 : index
      %c1_24 = arith.constant 1 : index
      %40 = vector.load %arg17[%c0_23, %c1_24] : memref<16x2xf32, #tpu.memory_space<vmem>>, vector<16x1xf32>
      tpu.vector_store %arg17[%c0_23, %c1_24], %39 {strides = array<i32>} : memref<16x2xf32, #tpu.memory_space<vmem>>, vector<16x1xf32>,
    } else {
    }
    %c0_i32_8 = arith.constant 0 : i32
    %12 = arith.cmpi eq, %arg0, %c0_i32_8 : i32
    %13 = arith.andi %12, %0 : i1
    %14 = arith.extui %13 : i1 to i32
    %c0_i32_9 = arith.constant 0 : i32
    %15 = arith.cmpi ne, %14, %c0_i32_9 : i32
    scf.if %15 {
      %c0_17 = arith.constant 0 : index
      %c0_18 = arith.constant 0 : index
      %30 = vector.load %arg17[%c0_17, %c0_18] : memref<16x2xf32, #tpu.memory_space<vmem>>, vector<16x1xf32>
      %cst = arith.constant 3.906250e-03 : f32
      %31 = vector.broadcast %cst : f32 to vector<16x1xf32>
      %32 = arith.mulf %30, %31 : vector<16x1xf32>
      %c0_19 = arith.constant 0 : index
      %c1 = arith.constant 1 : index
      %33 = vector.load %arg17[%c0_19, %c1] : memref<16x2xf32, #tpu.memory_space<vmem>>, vector<16x1xf32>
      %cst_20 = arith.constant 3.906250e-03 : f32
      %34 = vector.broadcast %cst_20 : f32 to vector<16x1xf32>
      %35 = arith.mulf %33, %34 : vector<16x1xf32>
      %36 = arith.mulf %32, %32 : vector<16x1xf32>
      %37 = arith.subf %35, %36 : vector<16x1xf32>
      %c0_21 = arith.constant 0 : index
      %c0_22 = arith.constant 0 : index
      %38 = vector.load %arg4[%c0_21, %c0_22] : memref<16x1xf32, #tpu.memory_space<vmem>>, vector<16x1xf32>
      %cst_23 = arith.constant 9.99999974E-6 : f32
      %39 = vector.broadcast %cst_23 : f32 to vector<16x1xf32>
      %40 = arith.addf %37, %39 : vector<16x1xf32>
      %41 = math.rsqrt %40 : vector<16x1xf32>
      %42 = arith.mulf %38, %41 : vector<16x1xf32>
      %c0_24 = arith.constant 0 : index
      %c0_25 = arith.constant 0 : index
      %43 = vector.load %arg14[%c0_24, %c0_25] : memref<16x2xf32, #tpu.memory_space<vmem>>, vector<16x1xf32>
      tpu.vector_store %arg14[%c0_24, %c0_25], %42 {strides = array<i32>} : memref<16x2xf32, #tpu.memory_space<vmem>>, vector<16x1xf32>,
      %c0_26 = arith.constant 0 : index
      %c0_27 = arith.constant 0 : index
      %44 = vector.load %arg5[%c0_26, %c0_27] : memref<16x1xf32, #tpu.memory_space<vmem>>, vector<16x1xf32>
      %45 = arith.mulf %32, %42 : vector<16x1xf32>
      %46 = arith.subf %44, %45 : vector<16x1xf32>
      %c0_28 = arith.constant 0 : index
      %c1_29 = arith.constant 1 : index
      %47 = vector.load %arg14[%c0_28, %c1_29] : memref<16x2xf32, #tpu.memory_space<vmem>>, vector<16x1xf32>
      tpu.vector_store %arg14[%c0_28, %c1_29], %46 {strides = array<i32>} : memref<16x2xf32, #tpu.memory_space<vmem>>, vector<16x1xf32>,
    } else {
    }
    %c1_i32_10 = arith.constant 1 : i32
    %16 = arith.cmpi eq, %arg0, %c1_i32_10 : i32
    %17 = arith.extui %16 : i1 to i32
    %c0_i32_11 = arith.constant 0 : i32
    %18 = arith.cmpi ne, %17, %c0_i32_11 : i32
    scf.if %18 {
      %c0_17 = arith.constant 0 : index
      %c0_18 = arith.constant 0 : index
      %30 = vector.load %arg14[%c0_17, %c0_18] : memref<16x2xf32, #tpu.memory_space<vmem>>, vector<16x1xf32>
      %31 = vector.broadcast %30 : vector<16x1xf32> to vector<16x128xf32>
      %32 = arith.mulf %5, %31 : vector<16x128xf32>
      %c0_19 = arith.constant 0 : index
      %c1 = arith.constant 1 : index
      %33 = vector.load %arg14[%c0_19, %c1] : memref<16x2xf32, #tpu.memory_space<vmem>>, vector<16x1xf32>
      %34 = vector.broadcast %33 : vector<16x1xf32> to vector<16x128xf32>
      %35 = arith.addf %32, %34 : vector<16x128xf32>
      %cst = arith.constant 0.000000e+00 : f32
      %36 = vector.broadcast %cst : f32 to vector<16x128xf32>
      %37 = arith.maximumf %35, %36 : vector<16x128xf32>
      %c0_20 = arith.constant 0 : index
      %c0_21 = arith.constant 0 : index
      %38 = vector.load %arg6[%c0_20, %c0_21] : memref<4x16xf32, #tpu.memory_space<vmem>>, vector<4x16xf32>
      %39 = arith.truncf %38 : vector<4x16xf32> to vector<4x16xbf16>
      %40 = arith.truncf %37 : vector<16x128xf32> to vector<16x128xbf16>
      %cst_22 = arith.constant dense<0.000000e+00> : vector<4x128xf32>
      %41 = tpu.matmul %39, %40, %cst_22 {dimension_numbers = #tpu.dot_dimension_numbers<[1], [0], [0], [1], [0, 0, 1, 1], [], []>} : vector<4x16xbf16>, vector<16x128xbf16>, vector<4x128xf32> -> vector<4x128xf32>
      %c0_23 = arith.constant 0 : index
      %c0_24 = arith.constant 0 : index
      %42 = vector.load %arg7[%c0_23, %c0_24] : memref<4x1xf32, #tpu.memory_space<vmem>>, vector<4x1xf32>
      %43 = vector.broadcast %42 : vector<4x1xf32> to vector<4x128xf32>
      %44 = arith.addf %41, %43 : vector<4x128xf32>
      %c0_25 = arith.constant 0 : index
      %c0_26 = arith.constant 0 : index
      %45 = vector.load %arg18[%c0_25, %c0_26] : memref<4x2xf32, #tpu.memory_space<vmem>>, vector<4x1xf32>
      %cst_27 = arith.constant dense<0.000000e+00> : vector<4xf32>
      %46 = vector.multi_reduction <add>, %44, %cst_27 [1] : vector<4x128xf32> to vector<4xf32>
      %47 = vector.shape_cast %46 : vector<4xf32> to vector<4x1xf32>
      %48 = arith.addf %45, %47 : vector<4x1xf32>
      %c0_28 = arith.constant 0 : index
      %c0_29 = arith.constant 0 : index
      %49 = vector.load %arg18[%c0_28, %c0_29] : memref<4x2xf32, #tpu.memory_space<vmem>>, vector<4x1xf32>
      tpu.vector_store %arg18[%c0_28, %c0_29], %48 {strides = array<i32>} : memref<4x2xf32, #tpu.memory_space<vmem>>, vector<4x1xf32>,
      %c0_30 = arith.constant 0 : index
      %c1_31 = arith.constant 1 : index
      %50 = vector.load %arg18[%c0_30, %c1_31] : memref<4x2xf32, #tpu.memory_space<vmem>>, vector<4x1xf32>
      %51 = arith.mulf %44, %44 : vector<4x128xf32>
      %cst_32 = arith.constant dense<0.000000e+00> : vector<4xf32>
      %52 = vector.multi_reduction <add>, %51, %cst_32 [1] : vector<4x128xf32> to vector<4xf32>
      %53 = vector.shape_cast %52 : vector<4xf32> to vector<4x1xf32>
      %54 = arith.addf %50, %53 : vector<4x1xf32>
      %c0_33 = arith.constant 0 : index
      %c1_34 = arith.constant 1 : index
      %55 = vector.load %arg18[%c0_33, %c1_34] : memref<4x2xf32, #tpu.memory_space<vmem>>, vector<4x1xf32>
      tpu.vector_store %arg18[%c0_33, %c1_34], %54 {strides = array<i32>} : memref<4x2xf32, #tpu.memory_space<vmem>>, vector<4x1xf32>,
    } else {
    }
    %c1_i32_12 = arith.constant 1 : i32
    %19 = arith.cmpi eq, %arg0, %c1_i32_12 : i32
    %20 = arith.andi %19, %0 : i1
    %21 = arith.extui %20 : i1 to i32
    %c0_i32_13 = arith.constant 0 : i32
    %22 = arith.cmpi ne, %21, %c0_i32_13 : i32
    scf.if %22 {
      %c0_17 = arith.constant 0 : index
      %c0_18 = arith.constant 0 : index
      %30 = vector.load %arg18[%c0_17, %c0_18] : memref<4x2xf32, #tpu.memory_space<vmem>>, vector<4x1xf32>
      %cst = arith.constant 3.906250e-03 : f32
      %31 = vector.broadcast %cst : f32 to vector<4x1xf32>
      %32 = arith.mulf %30, %31 : vector<4x1xf32>
      %c0_19 = arith.constant 0 : index
      %c1 = arith.constant 1 : index
      %33 = vector.load %arg18[%c0_19, %c1] : memref<4x2xf32, #tpu.memory_space<vmem>>, vector<4x1xf32>
      %cst_20 = arith.constant 3.906250e-03 : f32
      %34 = vector.broadcast %cst_20 : f32 to vector<4x1xf32>
      %35 = arith.mulf %33, %34 : vector<4x1xf32>
      %36 = arith.mulf %32, %32 : vector<4x1xf32>
      %37 = arith.subf %35, %36 : vector<4x1xf32>
      %c0_21 = arith.constant 0 : index
      %c0_22 = arith.constant 0 : index
      %38 = vector.load %arg8[%c0_21, %c0_22] : memref<4x1xf32, #tpu.memory_space<vmem>>, vector<4x1xf32>
      %cst_23 = arith.constant 9.99999974E-6 : f32
      %39 = vector.broadcast %cst_23 : f32 to vector<4x1xf32>
      %40 = arith.addf %37, %39 : vector<4x1xf32>
      %41 = math.rsqrt %40 : vector<4x1xf32>
      %42 = arith.mulf %38, %41 : vector<4x1xf32>
      %c0_24 = arith.constant 0 : index
      %c0_25 = arith.constant 0 : index
      %43 = vector.load %arg15[%c0_24, %c0_25] : memref<4x2xf32, #tpu.memory_space<vmem>>, vector<4x1xf32>
      tpu.vector_store %arg15[%c0_24, %c0_25], %42 {strides = array<i32>} : memref<4x2xf32, #tpu.memory_space<vmem>>, vector<4x1xf32>,
      %c0_26 = arith.constant 0 : index
      %c0_27 = arith.constant 0 : index
      %44 = vector.load %arg9[%c0_26, %c0_27] : memref<4x1xf32, #tpu.memory_space<vmem>>, vector<4x1xf32>
      %45 = arith.mulf %32, %42 : vector<4x1xf32>
      %46 = arith.subf %44, %45 : vector<4x1xf32>
      %c0_28 = arith.constant 0 : index
      %c1_29 = arith.constant 1 : index
      %47 = vector.load %arg15[%c0_28, %c1_29] : memref<4x2xf32, #tpu.memory_space<vmem>>, vector<4x1xf32>
      tpu.vector_store %arg15[%c0_28, %c1_29], %46 {strides = array<i32>} : memref<4x2xf32, #tpu.memory_space<vmem>>, vector<4x1xf32>,
    } else {
    }
    %c2_i32 = arith.constant 2 : i32
    %23 = arith.cmpi eq, %arg0, %c2_i32 : i32
    %24 = arith.extui %23 : i1 to i32
    %c0_i32_14 = arith.constant 0 : i32
    %25 = arith.cmpi ne, %24, %c0_i32_14 : i32
    scf.if %25 {
      %c0_17 = arith.constant 0 : index
      %c0_18 = arith.constant 0 : index
      %30 = vector.load %arg14[%c0_17, %c0_18] : memref<16x2xf32, #tpu.memory_space<vmem>>, vector<16x1xf32>
      %31 = vector.broadcast %30 : vector<16x1xf32> to vector<16x128xf32>
      %32 = arith.mulf %5, %31 : vector<16x128xf32>
      %c0_19 = arith.constant 0 : index
      %c1 = arith.constant 1 : index
      %33 = vector.load %arg14[%c0_19, %c1] : memref<16x2xf32, #tpu.memory_space<vmem>>, vector<16x1xf32>
      %34 = vector.broadcast %33 : vector<16x1xf32> to vector<16x128xf32>
      %35 = arith.addf %32, %34 : vector<16x128xf32>
      %cst = arith.constant 0.000000e+00 : f32
      %36 = vector.broadcast %cst : f32 to vector<16x128xf32>
      %37 = arith.maximumf %35, %36 : vector<16x128xf32>
      %c0_20 = arith.constant 0 : index
      %c0_21 = arith.constant 0 : index
      %38 = vector.load %arg6[%c0_20, %c0_21] : memref<4x16xf32, #tpu.memory_space<vmem>>, vector<4x16xf32>
      %39 = arith.truncf %38 : vector<4x16xf32> to vector<4x16xbf16>
      %40 = arith.truncf %37 : vector<16x128xf32> to vector<16x128xbf16>
      %cst_22 = arith.constant dense<0.000000e+00> : vector<4x128xf32>
      %41 = tpu.matmul %39, %40, %cst_22 {dimension_numbers = #tpu.dot_dimension_numbers<[1], [0], [0], [1], [0, 0, 1, 1], [], []>} : vector<4x16xbf16>, vector<16x128xbf16>, vector<4x128xf32> -> vector<4x128xf32>
      %c0_23 = arith.constant 0 : index
      %c0_24 = arith.constant 0 : index
      %42 = vector.load %arg7[%c0_23, %c0_24] : memref<4x1xf32, #tpu.memory_space<vmem>>, vector<4x1xf32>
      %43 = vector.broadcast %42 : vector<4x1xf32> to vector<4x128xf32>
      %44 = arith.addf %41, %43 : vector<4x128xf32>
      %c0_25 = arith.constant 0 : index
      %c0_26 = arith.constant 0 : index
      %45 = vector.load %arg15[%c0_25, %c0_26] : memref<4x2xf32, #tpu.memory_space<vmem>>, vector<4x1xf32>
      %46 = vector.broadcast %45 : vector<4x1xf32> to vector<4x128xf32>
      %47 = arith.mulf %44, %46 : vector<4x128xf32>
      %c0_27 = arith.constant 0 : index
      %c1_28 = arith.constant 1 : index
      %48 = vector.load %arg15[%c0_27, %c1_28] : memref<4x2xf32, #tpu.memory_space<vmem>>, vector<4x1xf32>
      %49 = vector.broadcast %48 : vector<4x1xf32> to vector<4x128xf32>
      %50 = arith.addf %47, %49 : vector<4x128xf32>
      %cst_29 = arith.constant 0.000000e+00 : f32
      %51 = vector.broadcast %cst_29 : f32 to vector<4x128xf32>
      %52 = arith.maximumf %50, %51 : vector<4x128xf32>
      %c0_30 = arith.constant 0 : index
      %c0_31 = arith.constant 0 : index
      %53 = vector.load %arg10[%c0_30, %c0_31] : memref<4x12xf32, #tpu.memory_space<vmem>>, vector<4x12xf32>
      %c0_32 = arith.constant 0 : index
      %c0_33 = arith.constant 0 : index
      %54 = vector.load %arg11[%c0_32, %c0_33] : memref<4x1xf32, #tpu.memory_space<vmem>>, vector<4x1xf32>
      %55 = tpu.iota {dimensions = array<i32: 1>} : vector<4x128xi32>
      %c0_i32_34 = arith.constant 0 : i32
      %56 = vector.broadcast %c0_i32_34 : i32 to vector<4x128xi32>
      %57 = arith.cmpi eq, %55, %56 : vector<4x128xi32>
      %c1_i32_35 = arith.constant 1 : i32
      %58 = tpu.dynamic_rotate %52 by %c1_i32_35 dim 1 : vector<4x128xf32>, i32 -> vector<4x128xf32>
      %cst_36 = arith.constant 0.000000e+00 : f32
      %59 = vector.broadcast %cst_36 : f32 to vector<4x128xf32>
      %60 = arith.select %57, %59, %58 : vector<4x128xi1>, vector<4x128xf32>
      %c127_i32 = arith.constant 127 : i32
      %61 = vector.broadcast %c127_i32 : i32 to vector<4x128xi32>
      %62 = arith.cmpi eq, %55, %61 : vector<4x128xi32>
      %c127_i32_37 = arith.constant 127 : i32
      %63 = tpu.dynamic_rotate %52 by %c127_i32_37 dim 1 : vector<4x128xf32>, i32 -> vector<4x128xf32>
      %cst_38 = arith.constant 0.000000e+00 : f32
      %64 = vector.broadcast %cst_38 : f32 to vector<4x128xf32>
      %65 = arith.select %62, %64, %63 : vector<4x128xi1>, vector<4x128xf32>
      %66 = tpu.concatenate %60, %52, %65 in 0 : vector<4x128xf32>, vector<4x128xf32>, vector<4x128xf32> -> vector<12x128xf32>
      %67 = arith.truncf %53 : vector<4x12xf32> to vector<4x12xbf16>
      %68 = arith.truncf %66 : vector<12x128xf32> to vector<12x128xbf16>
      %cst_39 = arith.constant dense<0.000000e+00> : vector<4x128xf32>
      %69 = tpu.matmul %67, %68, %cst_39 {dimension_numbers = #tpu.dot_dimension_numbers<[1], [0], [0], [1], [0, 0, 1, 1], [], []>} : vector<4x12xbf16>, vector<12x128xbf16>, vector<4x128xf32> -> vector<4x128xf32>
      %70 = vector.broadcast %54 : vector<4x1xf32> to vector<4x128xf32>
      %71 = arith.addf %69, %70 : vector<4x128xf32>
      %c0_40 = arith.constant 0 : index
      %c0_41 = arith.constant 0 : index
      %72 = vector.load %arg18[%c0_40, %c0_41] : memref<4x2xf32, #tpu.memory_space<vmem>>, vector<4x1xf32>
      %cst_42 = arith.constant dense<0.000000e+00> : vector<4xf32>
      %73 = vector.multi_reduction <add>, %71, %cst_42 [1] : vector<4x128xf32> to vector<4xf32>
      %74 = vector.shape_cast %73 : vector<4xf32> to vector<4x1xf32>
      %75 = arith.addf %72, %74 : vector<4x1xf32>
      %c0_43 = arith.constant 0 : index
      %c0_44 = arith.constant 0 : index
      %76 = vector.load %arg18[%c0_43, %c0_44] : memref<4x2xf32, #tpu.memory_space<vmem>>, vector<4x1xf32>
      tpu.vector_store %arg18[%c0_43, %c0_44], %75 {strides = array<i32>} : memref<4x2xf32, #tpu.memory_space<vmem>>, vector<4x1xf32>,
      %c0_45 = arith.constant 0 : index
      %c1_46 = arith.constant 1 : index
      %77 = vector.load %arg18[%c0_45, %c1_46] : memref<4x2xf32, #tpu.memory_space<vmem>>, vector<4x1xf32>
      %78 = arith.mulf %71, %71 : vector<4x128xf32>
      %cst_47 = arith.constant dense<0.000000e+00> : vector<4xf32>
      %79 = vector.multi_reduction <add>, %78, %cst_47 [1] : vector<4x128xf32> to vector<4xf32>
      %80 = vector.shape_cast %79 : vector<4xf32> to vector<4x1xf32>
      %81 = arith.addf %77, %80 : vector<4x1xf32>
      %c0_48 = arith.constant 0 : index
      %c1_49 = arith.constant 1 : index
      %82 = vector.load %arg18[%c0_48, %c1_49] : memref<4x2xf32, #tpu.memory_space<vmem>>, vector<4x1xf32>
      tpu.vector_store %arg18[%c0_48, %c1_49], %81 {strides = array<i32>} : memref<4x2xf32, #tpu.memory_space<vmem>>, vector<4x1xf32>,
    } else {
    }
    %c2_i32_15 = arith.constant 2 : i32
    %26 = arith.cmpi eq, %arg0, %c2_i32_15 : i32
    %27 = arith.andi %26, %0 : i1
    %28 = arith.extui %27 : i1 to i32
    %c0_i32_16 = arith.constant 0 : i32
    %29 = arith.cmpi ne, %28, %c0_i32_16 : i32
    scf.if %29 {
      %c0_17 = arith.constant 0 : index
      %c0_18 = arith.constant 0 : index
      %30 = vector.load %arg18[%c0_17, %c0_18] : memref<4x2xf32, #tpu.memory_space<vmem>>, vector<4x1xf32>
      %cst = arith.constant 3.906250e-03 : f32
      %31 = vector.broadcast %cst : f32 to vector<4x1xf32>
      %32 = arith.mulf %30, %31 : vector<4x1xf32>
      %c0_19 = arith.constant 0 : index
      %c1 = arith.constant 1 : index
      %33 = vector.load %arg18[%c0_19, %c1] : memref<4x2xf32, #tpu.memory_space<vmem>>, vector<4x1xf32>
      %cst_20 = arith.constant 3.906250e-03 : f32
      %34 = vector.broadcast %cst_20 : f32 to vector<4x1xf32>
      %35 = arith.mulf %33, %34 : vector<4x1xf32>
      %36 = arith.mulf %32, %32 : vector<4x1xf32>
      %37 = arith.subf %35, %36 : vector<4x1xf32>
      %c0_21 = arith.constant 0 : index
      %c0_22 = arith.constant 0 : index
      %38 = vector.load %arg12[%c0_21, %c0_22] : memref<4x1xf32, #tpu.memory_space<vmem>>, vector<4x1xf32>
      %cst_23 = arith.constant 9.99999974E-6 : f32
      %39 = vector.broadcast %cst_23 : f32 to vector<4x1xf32>
      %40 = arith.addf %37, %39 : vector<4x1xf32>
      %41 = math.rsqrt %40 : vector<4x1xf32>
      %42 = arith.mulf %38, %41 : vector<4x1xf32>
      %c0_24 = arith.constant 0 : index
      %c0_25 = arith.constant 0 : index
      %43 = vector.load %arg16[%c0_24, %c0_25] : memref<4x2xf32, #tpu.memory_space<vmem>>, vector<4x1xf32>
      tpu.vector_store %arg16[%c0_24, %c0_25], %42 {strides = array<i32>} : memref<4x2xf32, #tpu.memory_space<vmem>>, vector<4x1xf32>,
      %c0_26 = arith.constant 0 : index
      %c0_27 = arith.constant 0 : index
      %44 = vector.load %arg13[%c0_26, %c0_27] : memref<4x1xf32, #tpu.memory_space<vmem>>, vector<4x1xf32>
      %45 = arith.mulf %32, %42 : vector<4x1xf32>
      %46 = arith.subf %44, %45 : vector<4x1xf32>
      %c0_28 = arith.constant 0 : index
      %c1_29 = arith.constant 1 : index
      %47 = vector.load %arg16[%c0_28, %c1_29] : memref<4x2xf32, #tpu.memory_space<vmem>>, vector<4x1xf32>
      tpu.vector_store %arg16[%c0_28, %c1_29], %46 {strides = array<i32>} : memref<4x2xf32, #tpu.memory_space<vmem>>, vector<4x1xf32>,
    } else {
    }
    return
  }
  func.func @transform_0(%arg0: i32, %arg1: i32) -> (i32, i32, i32) {
    %c0_i32 = arith.constant 0 : i32
    %c0_i32_0 = arith.constant 0 : i32
    %c0_i32_1 = arith.constant 0 : i32
    return %arg1, %c0_i32, %c0_i32_0 : i32, i32, i32
  }
  func.func @transform_1(%arg0: i32, %arg1: i32) -> (i32, i32, i32) {
    %c0_i32 = arith.constant 0 : i32
    %c0_i32_0 = arith.constant 0 : i32
    %c0_i32_1 = arith.constant 0 : i32
    return %arg1, %c0_i32, %c0_i32_0 : i32, i32, i32
  }
  func.func @transform_2(%arg0: i32, %arg1: i32) -> (i32, i32) {
    %c0_i32 = arith.constant 0 : i32
    %c0_i32_0 = arith.constant 0 : i32
    %c0_i32_1 = arith.constant 0 : i32
    return %c0_i32, %c0_i32_0 : i32, i32
  }
  func.func @transform_3(%arg0: i32, %arg1: i32) -> (i32, i32) {
    %c0_i32 = arith.constant 0 : i32
    %c0_i32_0 = arith.constant 0 : i32
    %c0_i32_1 = arith.constant 0 : i32
    return %c0_i32, %c0_i32_0 : i32, i32
  }
  func.func @transform_4(%arg0: i32, %arg1: i32) -> (i32, i32) {
    %c0_i32 = arith.constant 0 : i32
    %c0_i32_0 = arith.constant 0 : i32
    %c0_i32_1 = arith.constant 0 : i32
    return %c0_i32, %c0_i32_0 : i32, i32
  }
  func.func @transform_5(%arg0: i32, %arg1: i32) -> (i32, i32) {
    %c0_i32 = arith.constant 0 : i32
    %c0_i32_0 = arith.constant 0 : i32
    %c0_i32_1 = arith.constant 0 : i32
    return %c0_i32, %c0_i32_0 : i32, i32
  }
  func.func @transform_6(%arg0: i32, %arg1: i32) -> (i32, i32) {
    %c0_i32 = arith.constant 0 : i32
    %c0_i32_0 = arith.constant 0 : i32
    %c0_i32_1 = arith.constant 0 : i32
    return %c0_i32, %c0_i32_0 : i32, i32
  }
  func.func @transform_7(%arg0: i32, %arg1: i32) -> (i32, i32) {
    %c0_i32 = arith.constant 0 : i32
    %c0_i32_0 = arith.constant 0 : i32
    %c0_i32_1 = arith.constant 0 : i32
    return %c0_i32, %c0_i32_0 : i32, i32
  }
  func.func @transform_8(%arg0: i32, %arg1: i32) -> (i32, i32) {
    %c0_i32 = arith.constant 0 : i32
    %c0_i32_0 = arith.constant 0 : i32
    %c0_i32_1 = arith.constant 0 : i32
    return %c0_i32, %c0_i32_0 : i32, i32
  }
  func.func @transform_9(%arg0: i32, %arg1: i32) -> (i32, i32) {
    %c0_i32 = arith.constant 0 : i32
    %c0_i32_0 = arith.constant 0 : i32
    %c0_i32_1 = arith.constant 0 : i32
    return %c0_i32, %c0_i32_0 : i32, i32
  }
  func.func @transform_10(%arg0: i32, %arg1: i32) -> (i32, i32) {
    %c0_i32 = arith.constant 0 : i32
    %c0_i32_0 = arith.constant 0 : i32
    %c0_i32_1 = arith.constant 0 : i32
    return %c0_i32, %c0_i32_0 : i32, i32
  }
  func.func @transform_11(%arg0: i32, %arg1: i32) -> (i32, i32) {
    %c0_i32 = arith.constant 0 : i32
    %c0_i32_0 = arith.constant 0 : i32
    %c0_i32_1 = arith.constant 0 : i32
    return %c0_i32, %c0_i32_0 : i32, i32
  }
  func.func @transform_12(%arg0: i32, %arg1: i32) -> (i32, i32) {
    %c0_i32 = arith.constant 0 : i32
    %c0_i32_0 = arith.constant 0 : i32
    %c0_i32_1 = arith.constant 0 : i32
    return %c0_i32, %c0_i32_0 : i32, i32
  }
  func.func @transform_13(%arg0: i32, %arg1: i32) -> (i32, i32) {
    %c0_i32 = arith.constant 0 : i32
    %c0_i32_0 = arith.constant 0 : i32
    %c0_i32_1 = arith.constant 0 : i32
    return %c0_i32, %c0_i32_0 : i32, i32
  }
  func.func @transform_14(%arg0: i32, %arg1: i32) -> (i32, i32) {
    %c0_i32 = arith.constant 0 : i32
    %c0_i32_0 = arith.constant 0 : i32
    %c0_i32_1 = arith.constant 0 : i32
    return %c0_i32, %c0_i32_0 : i32, i32
  }
}

</mosaic_0001>

<llo_original>
// kernel: tpu_custom_call.1
$region0: #{tpu_custom_call.1}
  #allocation0 [shape = 'u32[]', space=smem, size = 0x4, offset = 0x4, fixed_abs, tag = 'smem constant byte address 0x4 - core index']
  #allocation1 [shape = 'u32[144,128]{1,0:T(1,128)}', space=vmem, size = 0x12000, scoped, tag = 'internal scratch']
  #allocation2 [shape = 'f32[16,2]{1,0:T(8,128)}', space=vmem, size = 0x2000, scoped, tag = 'scratch operand']
  #allocation3 [shape = 'f32[4,2]{1,0:T(4,128)}', space=vmem, size = 0x800, scoped, tag = 'scratch operand']
  %s0 = inlined_call_operand.vmem [shape: f32[2,8,128], index: 0, kind: input, shape index: {}]
  %s1 = inlined_call_operand.vmem [shape: f32[2,8,128], index: 1, kind: input, shape index: {}]
  %s2 = inlined_call_operand.vmem [shape: f32[16,1], index: 2, kind: input, shape index: {}]
  %s3 = inlined_call_operand.vmem [shape: f32[16,1], index: 3, kind: input, shape index: {}]
  %s4 = inlined_call_operand.vmem [shape: f32[4,16], index: 4, kind: input, shape index: {}]
  %s5 = inlined_call_operand.vmem [shape: f32[4,1], index: 5, kind: input, shape index: {}]
  %s6 = inlined_call_operand.vmem [shape: f32[4,1], index: 6, kind: input, shape index: {}]
  %s7 = inlined_call_operand.vmem [shape: f32[4,1], index: 7, kind: input, shape index: {}]
  %s8 = inlined_call_operand.vmem [shape: f32[4,12], index: 8, kind: input, shape index: {}]
  %s9 = inlined_call_operand.vmem [shape: f32[4,1], index: 9, kind: input, shape index: {}]
  %s10 = inlined_call_operand.vmem [shape: f32[4,1], index: 10, kind: input, shape index: {}]
  %s11 = inlined_call_operand.vmem [shape: f32[4,1], index: 11, kind: input, shape index: {}]
  %s12 = inlined_call_operand.vmem [shape: f32[16,2], index: 12, kind: output, shape index: {0}]
  %s13 = inlined_call_operand.vmem [shape: f32[4,2], index: 13, kind: output, shape index: {1}]
  %s14 = inlined_call_operand.vmem [shape: f32[4,2], index: 14, kind: output, shape index: {2}]
  %15 = xla_tuple %s12, %s13, %s14
  %s16 = sld [smem:[#allocation0]]
  $region125: #{tpu_custom_call.1} parent=0
    _
  %s18 = ssub.s32 1, %s16
  %s19 = scalar_select 0, %s18, %s16
  loop: start=0, step=1, limit=8
  $region2: #{tpu_custom_call.1} parent=0 // loop_pre_header
    _
  $region3: #{tpu_custom_call.1} parent=0 // loop_header
    %s21 = sphi 0, %s25
    %p22 = scmp.ge.s32.totalorder %s21, 8
    %s28 = sphi 0, %s40
    %s29 = sphi 0, %s36
    %s30 = sphi 0, %s28
    %s31 = sphi 0, %s29
    %s32 = sphi 0, %s30
    %s33 = sphi 0, %s31
    %s43 = sphi 0, %s45
    %s46 = sphi 0, %s43
    %s47 = sphi 0, %s46
    %s63 = sphi 0, %s47
    %s69 = sphi 0, %s71
    %s72 = sphi 0, %s69
    %s73 = sphi 0, %s72
    %s89 = sphi 0, %s73
    %s93 = sphi 0, %s93
    %s95 = sphi 0, %s93
    %s96 = sphi 0, %s95
    %s110 = sphi 0, %s96
    %s114 = sphi 0, %s114
    %s116 = sphi 0, %s114
    %s117 = sphi 0, %s116
    %s131 = sphi 0, %s117
    %s135 = sphi 0, %s135
    %s137 = sphi 0, %s135
    %s138 = sphi 0, %s137
    %s152 = sphi 0, %s138
    %s156 = sphi 0, %s156
    %s158 = sphi 0, %s156
    %s159 = sphi 0, %s158
    %s173 = sphi 0, %s159
    %s177 = sphi 0, %s177
    %s179 = sphi 0, %s177
    %s180 = sphi 0, %s179
    %s194 = sphi 0, %s180
    %s198 = sphi 0, %s198
    %s200 = sphi 0, %s198
    %s201 = sphi 0, %s200
    %s215 = sphi 0, %s201
    %s219 = sphi 0, %s219
    %s221 = sphi 0, %s219
    %s222 = sphi 0, %s221
    %s236 = sphi 0, %s222
    %s240 = sphi 0, %s240
    %s242 = sphi 0, %s240
    %s243 = sphi 0, %s242
    %s257 = sphi 0, %s243
    %s261 = sphi 0, %s261
    %s263 = sphi 0, %s261
    %s264 = sphi 0, %s263
    %s278 = sphi 0, %s264
    %s282 = sphi 0, %s282
    %s284 = sphi 0, %s282
    %s285 = sphi 0, %s284
    %s299 = sphi 0, %s285
    %s303 = sphi 0, %s303
    %s305 = sphi 0, %s303
    %s306 = sphi 0, %s305
    %s320 = sphi 0, %s306
    %s324 = sphi 0, %s324
    %s326 = sphi 0, %s324
    %s327 = sphi 0, %s326
    %s341 = sphi 0, %s327
    %s345 = sphi 0, %s345
    %s347 = sphi 0, %s345
    %s348 = sphi 0, %s347
    %s362 = sphi 0, %s348
  $region4: #{tpu_custom_call.1} parent=0 // loop_header_branch
    %24 = sbr.rel (%p22) target = $region8
  $region5: #{tpu_custom_call.1} parent=0 // loop_body
    %s26 = ssub.s32 %s21, 1
    %s27 = ssub.s32 %s21, 2
    %s34 = sadd.s32 1, %s29
    %p35 = scmp.ge.s32.totalorder %s34, 2
    %s36 = scalar_select %p35, 0, %s34
    %s37 = sadd.s32 1, %s28
    %s38 = scalar_select %p35, %s37, %s28
    %p39 = scmp.ge.s32.totalorder %s38, 3
    %s40 = scalar_select %p39, 0, %s38
    %s41 = ssub.s32 %s29, %s36
    %p42 = scmp.eq.s32.totalorder %s41, 0
    %s44 = sadd.s32 %s43, 1
    %s45 = scalar_select %p42, %s43, %s44
    %p48 = pneg %p42
    %p49 = scmp.eq.s32.totalorder %s21, 5
    %p50 = por %p48, %p49
    %p51 = scmp.ne.s32.totalorder %s43, %s46
    %p52 = scmp.eq.s32.totalorder %s21, 0
    %p53 = por %p51, %p52
    %p54 = scmp.ne.s32.totalorder %s43, %s46
    %p55 = scmp.eq.s32.totalorder %s26, 5
    %p56 = por %p54, %p55
    %p57 = scmp.ne.s32.totalorder %s46, %s47
    %p58 = scmp.eq.s32.totalorder %s26, 0
    %p59 = por %p57, %p58
    %p60 = scmp.ne.s32.totalorder %s46, %s47
    %p61 = scmp.eq.s32.totalorder %s27, 5
    %p62 = por %p60, %p61
    %p64 = scmp.ne.s32.totalorder %s47, %s63
    %p65 = scmp.eq.s32.totalorder %s27, 0
    %p66 = por %p64, %p65
    %s67 = ssub.s32 %s29, %s36
    %p68 = scmp.eq.s32.totalorder %s67, 0
    %s70 = sadd.s32 %s69, 1
    %s71 = scalar_select %p68, %s69, %s70
    %p74 = pneg %p68
    %p75 = scmp.eq.s32.totalorder %s21, 5
    %p76 = por %p74, %p75
    %p77 = scmp.ne.s32.totalorder %s69, %s72
    %p78 = scmp.eq.s32.totalorder %s21, 0
    %p79 = por %p77, %p78
    %p80 = scmp.ne.s32.totalorder %s69, %s72
    %p81 = scmp.eq.s32.totalorder %s26, 5
    %p82 = por %p80, %p81
    %p83 = scmp.ne.s32.totalorder %s72, %s73
    %p84 = scmp.eq.s32.totalorder %s26, 0
    %p85 = por %p83, %p84
    %p86 = scmp.ne.s32.totalorder %s72, %s73
    %p87 = scmp.eq.s32.totalorder %s27, 5
    %p88 = por %p86, %p87
    %p90 = scmp.ne.s32.totalorder %s73, %s89
    %p91 = scmp.eq.s32.totalorder %s27, 0
    %p92 = por %p90, %p91
    %s94 = sadd.s32 %s93, 1
    %p97 = scmp.eq.s32.totalorder %s21, 5
    %p98 = scmp.ne.s32.totalorder %s93, %s95
    %p99 = scmp.eq.s32.totalorder %s21, 0
    %p100 = por %p98, %p99
    %p101 = scmp.ne.s32.totalorder %s93, %s95
    %p102 = scmp.eq.s32.totalorder %s26, 5
    %p103 = por %p101, %p102
    %p104 = scmp.ne.s32.totalorder %s95, %s96
    %p105 = scmp.eq.s32.totalorder %s26, 0
    %p106 = por %p104, %p105
    %p107 = scmp.ne.s32.totalorder %s95, %s96
    %p108 = scmp.eq.s32.totalorder %s27, 5
    %p109 = por %p107, %p108
    %p111 = scmp.ne.s32.totalorder %s96, %s110
    %p112 = scmp.eq.s32.totalorder %s27, 0
    %p113 = por %p111, %p112
    %s115 = sadd.s32 %s114, 1
    %p118 = scmp.eq.s32.totalorder %s21, 5
    %p119 = scmp.ne.s32.totalorder %s114, %s116
    %p120 = scmp.eq.s32.totalorder %s21, 0
    %p121 = por %p119, %p120
    %p122 = scmp.ne.s32.totalorder %s114, %s116
    %p123 = scmp.eq.s32.totalorder %s26, 5
    %p124 = por %p122, %p123
    %p125 = scmp.ne.s32.totalorder %s116, %s117
    %p126 = scmp.eq.s32.totalorder %s26, 0
    %p127 = por %p125, %p126
    %p128 = scmp.ne.s32.totalorder %s116, %s117
    %p129 = scmp.eq.s32.totalorder %s27, 5
    %p130 = por %p128, %p129
    %p132 = scmp.ne.s32.totalorder %s117, %s131
    %p133 = scmp.eq.s32.totalorder %s27, 0
    %p134 = por %p132, %p133
    %s136 = sadd.s32 %s135, 1
    %p139 = scmp.eq.s32.totalorder %s21, 5
    %p140 = scmp.ne.s32.totalorder %s135, %s137
    %p141 = scmp.eq.s32.totalorder %s21, 0
    %p142 = por %p140, %p141
    %p143 = scmp.ne.s32.totalorder %s135, %s137
    %p144 = scmp.eq.s32.totalorder %s26, 5
    %p145 = por %p143, %p144
    %p146 = scmp.ne.s32.totalorder %s137, %s138
    %p147 = scmp.eq.s32.totalorder %s26, 0
    %p148 = por %p146, %p147
    %p149 = scmp.ne.s32.totalorder %s137, %s138
    %p150 = scmp.eq.s32.totalorder %s27, 5
    %p151 = por %p149, %p150
    %p153 = scmp.ne.s32.totalorder %s138, %s152
    %p154 = scmp.eq.s32.totalorder %s27, 0
    %p155 = por %p153, %p154
    %s157 = sadd.s32 %s156, 1
    %p160 = scmp.eq.s32.totalorder %s21, 5
    %p161 = scmp.ne.s32.totalorder %s156, %s158
    %p162 = scmp.eq.s32.totalorder %s21, 0
    %p163 = por %p161, %p162
    %p164 = scmp.ne.s32.totalorder %s156, %s158
    %p165 = scmp.eq.s32.totalorder %s26, 5
    %p166 = por %p164, %p165
    %p167 = scmp.ne.s32.totalorder %s158, %s159
    %p168 = scmp.eq.s32.totalorder %s26, 0
    %p169 = por %p167, %p168
    %p170 = scmp.ne.s32.totalorder %s158, %s159
    %p171 = scmp.eq.s32.totalorder %s27, 5
    %p172 = por %p170, %p171
    %p174 = scmp.ne.s32.totalorder %s159, %s173
    %p175 = scmp.eq.s32.totalorder %s27, 0
    %p176 = por %p174, %p175
    %s178 = sadd.s32 %s177, 1
    %p181 = scmp.eq.s32.totalorder %s21, 5
    %p182 = scmp.ne.s32.totalorder %s177, %s179
    %p183 = scmp.eq.s32.totalorder %s21, 0
    %p184 = por %p182, %p183
    %p185 = scmp.ne.s32.totalorder %s177, %s179
    %p186 = scmp.eq.s32.totalorder %s26, 5
    %p187 = por %p185, %p186
    %p188 = scmp.ne.s32.totalorder %s179, %s180
    %p189 = scmp.eq.s32.totalorder %s26, 0
    %p190 = por %p188, %p189
    %p191 = scmp.ne.s32.totalorder %s179, %s180
    %p192 = scmp.eq.s32.totalorder %s27, 5
    %p193 = por %p191, %p192
    %p195 = scmp.ne.s32.totalorder %s180, %s194
    %p196 = scmp.eq.s32.totalorder %s27, 0
    %p197 = por %p195, %p196
    %s199 = sadd.s32 %s198, 1
    %p202 = scmp.eq.s32.totalorder %s21, 5
    %p203 = scmp.ne.s32.totalorder %s198, %s200
    %p204 = scmp.eq.s32.totalorder %s21, 0
    %p205 = por %p203, %p204
    %p206 = scmp.ne.s32.totalorder %s198, %s200
    %p207 = scmp.eq.s32.totalorder %s26, 5
    %p208 = por %p206, %p207
    %p209 = scmp.ne.s32.totalorder %s200, %s201
    %p210 = scmp.eq.s32.totalorder %s26, 0
    %p211 = por %p209, %p210
    %p212 = scmp.ne.s32.totalorder %s200, %s201
    %p213 = scmp.eq.s32.totalorder %s27, 5
    %p214 = por %p212, %p213
    %p216 = scmp.ne.s32.totalorder %s201, %s215
    %p217 = scmp.eq.s32.totalorder %s27, 0
    %p218 = por %p216, %p217
    %s220 = sadd.s32 %s219, 1
    %p223 = scmp.eq.s32.totalorder %s21, 5
    %p224 = scmp.ne.s32.totalorder %s219, %s221
    %p225 = scmp.eq.s32.totalorder %s21, 0
    %p226 = por %p224, %p225
    %p227 = scmp.ne.s32.totalorder %s219, %s221
    %p228 = scmp.eq.s32.totalorder %s26, 5
    %p229 = por %p227, %p228
    %p230 = scmp.ne.s32.totalorder %s221, %s222
    %p231 = scmp.eq.s32.totalorder %s26, 0
    %p232 = por %p230, %p231
    %p233 = scmp.ne.s32.totalorder %s221, %s222
    %p234 = scmp.eq.s32.totalorder %s27, 5
    %p235 = por %p233, %p234
    %p237 = scmp.ne.s32.totalorder %s222, %s236
    %p238 = scmp.eq.s32.totalorder %s27, 0
    %p239 = por %p237, %p238
    %s241 = sadd.s32 %s240, 1
    %p244 = scmp.eq.s32.totalorder %s21, 5
    %p245 = scmp.ne.s32.totalorder %s240, %s242
    %p246 = scmp.eq.s32.totalorder %s21, 0
    %p247 = por %p245, %p246
    %p248 = scmp.ne.s32.totalorder %s240, %s242
    %p249 = scmp.eq.s32.totalorder %s26, 5
    %p250 = por %p248, %p249
    %p251 = scmp.ne.s32.totalorder %s242, %s243
    %p252 = scmp.eq.s32.totalorder %s26, 0
    %p253 = por %p251, %p252
    %p254 = scmp.ne.s32.totalorder %s242, %s243
    %p255 = scmp.eq.s32.totalorder %s27, 5
    %p256 = por %p254, %p255
    %p258 = scmp.ne.s32.totalorder %s243, %s257
    %p259 = scmp.eq.s32.totalorder %s27, 0
    %p260 = por %p258, %p259
    %s262 = sadd.s32 %s261, 1
    %p265 = scmp.eq.s32.totalorder %s21, 5
    %p266 = scmp.ne.s32.totalorder %s261, %s263
    %p267 = scmp.eq.s32.totalorder %s21, 0
    %p268 = por %p266, %p267
    %p269 = scmp.ne.s32.totalorder %s261, %s263
    %p270 = scmp.eq.s32.totalorder %s26, 5
    %p271 = por %p269, %p270
    %p272 = scmp.ne.s32.totalorder %s263, %s264
    %p273 = scmp.eq.s32.totalorder %s26, 0
    %p274 = por %p272, %p273
    %p275 = scmp.ne.s32.totalorder %s263, %s264
    %p276 = scmp.eq.s32.totalorder %s27, 5
    %p277 = por %p275, %p276
    %p279 = scmp.ne.s32.totalorder %s264, %s278
    %p280 = scmp.eq.s32.totalorder %s27, 0
    %p281 = por %p279, %p280
    %s283 = sadd.s32 %s282, 1
    %p286 = scmp.eq.s32.totalorder %s21, 5
    %p287 = scmp.ne.s32.totalorder %s282, %s284
    %p288 = scmp.eq.s32.totalorder %s21, 0
    %p289 = por %p287, %p288
    %p290 = scmp.ne.s32.totalorder %s282, %s284
    %p291 = scmp.eq.s32.totalorder %s26, 5
    %p292 = por %p290, %p291
    %p293 = scmp.ne.s32.totalorder %s284, %s285
    %p294 = scmp.eq.s32.totalorder %s26, 0
    %p295 = por %p293, %p294
    %p296 = scmp.ne.s32.totalorder %s284, %s285
    %p297 = scmp.eq.s32.totalorder %s27, 5
    %p298 = por %p296, %p297
    %p300 = scmp.ne.s32.totalorder %s285, %s299
    %p301 = scmp.eq.s32.totalorder %s27, 0
    %p302 = por %p300, %p301
    %s304 = sadd.s32 %s303, 1
    %p307 = scmp.eq.s32.totalorder %s21, 5
    %p308 = scmp.ne.s32.totalorder %s303, %s305
    %p309 = scmp.eq.s32.totalorder %s21, 0
    %p310 = por %p308, %p309
    %p311 = scmp.ne.s32.totalorder %s303, %s305
    %p312 = scmp.eq.s32.totalorder %s26, 5
    %p313 = por %p311, %p312
    %p314 = scmp.ne.s32.totalorder %s305, %s306
    %p315 = scmp.eq.s32.totalorder %s26, 0
    %p316 = por %p314, %p315
    %p317 = scmp.ne.s32.totalorder %s305, %s306
    %p318 = scmp.eq.s32.totalorder %s27, 5
    %p319 = por %p317, %p318
    %p321 = scmp.ne.s32.totalorder %s306, %s320
    %p322 = scmp.eq.s32.totalorder %s27, 0
    %p323 = por %p321, %p322
    %s325 = sadd.s32 %s324, 1
    %p328 = scmp.eq.s32.totalorder %s21, 5
    %p329 = scmp.ne.s32.totalorder %s324, %s326
    %p330 = scmp.eq.s32.totalorder %s21, 0
    %p331 = por %p329, %p330
    %p332 = scmp.ne.s32.totalorder %s324, %s326
    %p333 = scmp.eq.s32.totalorder %s26, 5
    %p334 = por %p332, %p333
    %p335 = scmp.ne.s32.totalorder %s326, %s327
    %p336 = scmp.eq.s32.totalorder %s26, 0
    %p337 = por %p335, %p336
    %p338 = scmp.ne.s32.totalorder %s326, %s327
    %p339 = scmp.eq.s32.totalorder %s27, 5
    %p340 = por %p338, %p339
    %p342 = scmp.ne.s32.totalorder %s327, %s341
    %p343 = scmp.eq.s32.totalorder %s27, 0
    %p344 = por %p342, %p343
    %s346 = sadd.s32 %s345, 1
    %p349 = scmp.eq.s32.totalorder %s21, 5
    %p350 = scmp.ne.s32.totalorder %s345, %s347
    %p351 = scmp.eq.s32.totalorder %s21, 0
    %p352 = por %p350, %p351
    %p353 = scmp.ne.s32.totalorder %s345, %s347
    %p354 = scmp.eq.s32.totalorder %s26, 5
    %p355 = por %p353, %p354
    %p356 = scmp.ne.s32.totalorder %s347, %s348
    %p357 = scmp.eq.s32.totalorder %s26, 0
    %p358 = por %p356, %p357
    %p359 = scmp.ne.s32.totalorder %s347, %s348
    %p360 = scmp.eq.s32.totalorder %s27, 5
    %p361 = por %p359, %p360
    %p363 = scmp.ne.s32.totalorder %s348, %s362
    %p364 = scmp.eq.s32.totalorder %s27, 0
    %p365 = por %p363, %p364
    %p366 = scmp.le.s32.totalorder 1, %s21
    %p367 = scmp.lt.s32.totalorder %s21, 7
    %p368 = pnand %p366, %p367
    %p369 = pneg %p368
    // Predicated region
    $region9: #{tpu_custom_call.1} parent=5 // pred_check
      _
    $region10: #{tpu_custom_call.1} parent=5 // pred_check_branch
      %371 = sbr.rel (%p368) target = $region12
    $region11: #{tpu_custom_call.1} parent=5 // pred_region
      %s372 = ssub.s32 %s21, 1
      // Predicated region
      $region13: #{tpu_custom_call.1} parent=11 // pred_check
        %p373 = pneg %p106
      $region14: #{tpu_custom_call.1} parent=11 // pred_check_branch
        %375 = sbr.rel (%p373) target = $region16
      $region15: #{tpu_custom_call.1} parent=11 // pred_region
        _
      $region16: #{tpu_custom_call.1} parent=11 // pred_fallthru
        _
      // Predicated region
      $region17: #{tpu_custom_call.1} parent=11 // pred_check
        %p376 = pneg %p127
      $region18: #{tpu_custom_call.1} parent=11 // pred_check_branch
        %378 = sbr.rel (%p376) target = $region20
      $region19: #{tpu_custom_call.1} parent=11 // pred_region
        _
      $region20: #{tpu_custom_call.1} parent=11 // pred_fallthru
        _
      // Predicated region
      $region21: #{tpu_custom_call.1} parent=11 // pred_check
        %p379 = pneg %p148
      $region22: #{tpu_custom_call.1} parent=11 // pred_check_branch
        %381 = sbr.rel (%p379) target = $region24
      $region23: #{tpu_custom_call.1} parent=11 // pred_region
        _
      $region24: #{tpu_custom_call.1} parent=11 // pred_fallthru
        _
      // Predicated region
      $region25: #{tpu_custom_call.1} parent=11 // pred_check
        %p382 = pneg %p169
      $region26: #{tpu_custom_call.1} parent=11 // pred_check_branch
        %384 = sbr.rel (%p382) target = $region28
      $region27: #{tpu_custom_call.1} parent=11 // pred_region
        _
      $region28: #{tpu_custom_call.1} parent=11 // pred_fallthru
        _
      // Predicated region
      $region29: #{tpu_custom_call.1} parent=11 // pred_check
        %p385 = pneg %p190
      $region30: #{tpu_custom_call.1} parent=11 // pred_check_branch
        %387 = sbr.rel (%p385) target = $region32
      $region31: #{tpu_custom_call.1} parent=11 // pred_region
        _
      $region32: #{tpu_custom_call.1} parent=11 // pred_fallthru
        _
      // Predicated region
      $region33: #{tpu_custom_call.1} parent=11 // pred_check
        %p388 = pneg %p211
      $region34: #{tpu_custom_call.1} parent=11 // pred_check_branch
        %390 = sbr.rel (%p388) target = $region36
      $region35: #{tpu_custom_call.1} parent=11 // pred_region
        _
      $region36: #{tpu_custom_call.1} parent=11 // pred_fallthru
        _
      // Predicated region
      $region37: #{tpu_custom_call.1} parent=11 // pred_check
        %p391 = pneg %p232
      $region38: #{tpu_custom_call.1} parent=11 // pred_check_branch
        %393 = sbr.rel (%p391) target = $region40
      $region39: #{tpu_custom_call.1} parent=11 // pred_region
        _
      $region40: #{tpu_custom_call.1} parent=11 // pred_fallthru
        _
      // Predicated region
      $region41: #{tpu_custom_call.1} parent=11 // pred_check
        %p394 = pneg %p253
      $region42: #{tpu_custom_call.1} parent=11 // pred_check_branch
        %396 = sbr.rel (%p394) target = $region44
      $region43: #{tpu_custom_call.1} parent=11 // pred_region
        _
      $region44: #{tpu_custom_call.1} parent=11 // pred_fallthru
        _
      // Predicated region
      $region45: #{tpu_custom_call.1} parent=11 // pred_check
        %p397 = pneg %p274
      $region46: #{tpu_custom_call.1} parent=11 // pred_check_branch
        %399 = sbr.rel (%p397) target = $region48
      $region47: #{tpu_custom_call.1} parent=11 // pred_region
        _
      $region48: #{tpu_custom_call.1} parent=11 // pred_fallthru
        _
      // Predicated region
      $region49: #{tpu_custom_call.1} parent=11 // pred_check
        %p400 = pneg %p295
      $region50: #{tpu_custom_call.1} parent=11 // pred_check_branch
        %402 = sbr.rel (%p400) target = $region52
      $region51: #{tpu_custom_call.1} parent=11 // pred_region
        _
      $region52: #{tpu_custom_call.1} parent=11 // pred_fallthru
        _
    $region12: #{tpu_custom_call.1} parent=5 // pred_fallthru
      _
    %p403 = scmp.lt.s32.totalorder %s21, 6
    // Predicated region
    $region53: #{tpu_custom_call.1} parent=5 // pred_check
      %p404 = pneg %p403
    $region54: #{tpu_custom_call.1} parent=5 // pred_check_branch
      %406 = sbr.rel (%p404) target = $region56
    $region55: #{tpu_custom_call.1} parent=5 // pred_region
      // Predicated region
      $region57: #{tpu_custom_call.1} parent=55 // pred_check
        %p407 = pneg %p53
      $region58: #{tpu_custom_call.1} parent=55 // pred_check_branch
        %409 = sbr.rel (%p407) target = $region60
      $region59: #{tpu_custom_call.1} parent=55 // pred_region
        %p410 = scmp.lt.s32.totalorder %s29, 1
        %s411 = scalar_select %p410, %s29, 1
        %s412 = smul.addr %s411, 8
        %s413 = scalar_lea.vmem %s0, %s412
      $region60: #{tpu_custom_call.1} parent=55 // pred_fallthru
        _
      // Predicated region
      $region61: #{tpu_custom_call.1} parent=55 // pred_check
        %p414 = pneg %p79
      $region62: #{tpu_custom_call.1} parent=55 // pred_check_branch
        %416 = sbr.rel (%p414) target = $region64
      $region63: #{tpu_custom_call.1} parent=55 // pred_region
        %p417 = scmp.lt.s32.totalorder %s29, 1
        %s418 = scalar_select %p417, %s29, 1
        %s419 = smul.addr %s418, 8
        %s420 = scalar_lea.vmem %s1, %s419
      $region64: #{tpu_custom_call.1} parent=55 // pred_fallthru
        _
    $region56: #{tpu_custom_call.1} parent=5 // pred_fallthru
      _
    %p421 = scmp.le.s32.totalorder 1, %s21
    %p422 = scmp.lt.s32.totalorder %s21, 7
    %p423 = pnand %p421, %p422
    %p424 = pneg %p423
    // Predicated region
    $region65: #{tpu_custom_call.1} parent=5 // pred_check
      _
    $region66: #{tpu_custom_call.1} parent=5 // pred_check_branch
      %426 = sbr.rel (%p423) target = $region68
    $region67: #{tpu_custom_call.1} parent=5 // pred_region
      %s427 = ssub.s32 %s21, 1
      %p428 = scmp.lt.s32.totalorder %s31, 1
      %s429 = scalar_select %p428, %s31, 1
      %s430 = smul.addr %s429, 8
      %s431 = scalar_lea.vmem %s0, %s430
      %p432 = pneg %p59
      %p433 = pneg %p56
      %p434 = scmp.lt.s32.totalorder %s31, 1
      %s435 = scalar_select %p434, %s31, 1
      %s436 = smul.addr %s435, 8
      %s437 = scalar_lea.vmem %s1, %s436
      %p438 = pneg %p85
      %p439 = pneg %p82
      %p440 = pneg %p106
      %p441 = pneg %p103
      %p442 = pneg %p127
      %p443 = pneg %p124
      %p444 = pneg %p148
      %p445 = pneg %p145
      %p446 = pneg %p169
      %p447 = pneg %p166
      %p448 = pneg %p190
      %p449 = pneg %p187
      %p450 = pneg %p211
      %p451 = pneg %p208
      %p452 = pneg %p232
      %p453 = pneg %p229
      %p454 = pneg %p253
      %p455 = pneg %p250
      %p456 = pneg %p274
      %p457 = pneg %p271
      %p458 = pneg %p295
      %p459 = pneg %p292
      %p460 = pneg %p316
      %p461 = pneg %p313
      %p462 = pneg %p337
      %p463 = pneg %p334
      %p464 = pneg %p358
      %p465 = pneg %p355
      %p466 = scmp.lt.s32.totalorder %s31, 1
      %s467 = scalar_select %p466, %s31, 1
      %s468 = smul.addr %s467, 8
      %s469 = scalar_lea.vmem %s0, %s468
      %p470 = scmp.lt.s32.totalorder %s31, 1
      %s471 = scalar_select %p470, %s31, 1
      %s472 = smul.addr %s471, 8
      %s473 = scalar_lea.vmem %s1, %s472
      %p475 = scmp.eq.s32.totalorder %s31, 1
      %v476 = vld [vmem:[%s469] sm:$0xff]
      %v477 = vld [vmem:[%s473] sm:$0xff]
      %p478 = scmp.eq.s32.totalorder %s31, 0
      // Predicated region
      $region69: #{tpu_custom_call.1} parent=67 // pred_check
        %p479 = pneg %p478
      $region70: #{tpu_custom_call.1} parent=67 // pred_check_branch
        %481 = sbr.rel (%p479) target = $region72
      $region71: #{tpu_custom_call.1} parent=67 // pred_region
        %vm482 = vcmask 15360
        %483 = vst.msk [vmem:[#allocation2] sm:$0xff] %vm482, 0.0
        %484 = vst.msk [vmem:[#allocation2 + $0x8] sm:$0xff] %vm482, 0.0
        %vm485 = vcmask 11264
        %486 = vst.msk [vmem:[#allocation3] sm:$0xf] %vm485, 0.0
      $region72: #{tpu_custom_call.1} parent=67 // pred_fallthru
        _
      %p487 = scmp.eq.s32.totalorder %s30, 0
      // Predicated region
      $region73: #{tpu_custom_call.1} parent=67 // pred_check
        %p488 = pneg %p487
      $region74: #{tpu_custom_call.1} parent=67 // pred_check_branch
        %490 = sbr.rel (%p488) target = $region76
      $region75: #{tpu_custom_call.1} parent=67 // pred_region
        %v491 = vld [vmem:[#allocation2] sm:$0xff]
        %v492 = vld [vmem:[#allocation2 + $0x8] sm:$0xff]
        %493 = vadd.xlane.f32.xlu0 %v476
        %v494 = vpop.xlane.xlu0 %493
        %495 = vadd.xlane.f32.xlu0 %v477
        %v496 = vpop.xlane.xlu0 %495
        %v497 = vadd.f32 %v491, %v494
        %v498 = vadd.f32 %v492, %v496
        %vm499 = vcmask 7168
        %500 = vst.msk [vmem:[#allocation2] sm:$0xff] %vm499, %v497
        %501 = vst.msk [vmem:[#allocation2 + $0x8] sm:$0xff] %vm499, %v498
        %v502 = vld [vmem:[#allocation2] sm:$0xff]
        %v503 = vld [vmem:[#allocation2 + $0x8] sm:$0xff]
        %v504 = vmul.f32 %v476, %v476
        %v505 = vmul.f32 %v477, %v477
        %506 = vadd.xlane.f32.xlu0 %v504
        %v507 = vpop.xlane.xlu0 %506
        %508 = vadd.xlane.f32.xlu0 %v505
        %v509 = vpop.xlane.xlu0 %508
        %v510 = vadd.f32 %v502, %v507
        %v511 = vadd.f32 %v503, %v509
        %vm512 = vcmask 15368
        %513 = vst.msk [vmem:[#allocation2] sm:$0xff] %vm512, %v510
        %514 = vst.msk [vmem:[#allocation2 + $0x8] sm:$0xff] %vm512, %v511
      $region76: #{tpu_custom_call.1} parent=67 // pred_fallthru
        _
      %p515 = pnand %p487, %p475
      %p516 = pneg %p515
      // Predicated region
      $region77: #{tpu_custom_call.1} parent=67 // pred_check
        _
      $region78: #{tpu_custom_call.1} parent=67 // pred_check_branch
        %518 = sbr.rel (%p515) target = $region80
      $region79: #{tpu_custom_call.1} parent=67 // pred_region
        %v519 = vld [vmem:[#allocation2] sm:$0xff]
        %v520 = vld [vmem:[#allocation2 + $0x8] sm:$0xff]
        %v521 = vmul.f32 %v519, 0.00390625
        %v522 = vmul.f32 %v520, 0.00390625
        %v523 = vmul.f32 %v521, %v521
        %v524 = vmul.f32 %v522, %v522
        %527 = vrot.lane.b32.xlu0 %v523, 1
        %v528 = vpop.permute.xlu0 %527
        %529 = vrot.lane.b32.xlu0 %v524, 1
        %v530 = vpop.permute.xlu0 %529
        %v533 = vsub.f32 %v521, %v528
        %v534 = vsub.f32 %v522, %v530
        %v535 = vld [vmem:[%s2] sm:$0xff]
        %v536 = vld [vmem:[%s2 + $0x8] sm:$0xff]
        %v537 = vadd.f32 %v533, 1e-05
        %v538 = vadd.f32 %v534, 1e-05
        %v539 = vrsqrt.pop %v537
        %v540 = vrsqrt.pop %v538
        %543 = vrot.lane.b32.xlu0 %v539, 127
        %v544 = vpop.permute.xlu0 %543
        %545 = vrot.lane.b32.xlu0 %v540, 127
        %v546 = vpop.permute.xlu0 %545
        %v549 = vmul.f32 %v535, %v544
        %v550 = vmul.f32 %v536, %v546
        %vm551 = vcmask 7168
        %552 = vst.msk [vmem:[%s12] sm:$0xff] %vm551, %v549
        %553 = vst.msk [vmem:[%s12 + $0x8] sm:$0xff] %vm551, %v550
        %v554 = vld [vmem:[%s3] sm:$0xff]
        %v555 = vld [vmem:[%s3 + $0x8] sm:$0xff]
        %v556 = vmul.f32 %v521, %v549
        %v557 = vmul.f32 %v522, %v550
        %v558 = vsub.f32 %v554, %v556
        %v559 = vsub.f32 %v555, %v557
        %562 = vrot.lane.b32.xlu0 %v558, 1
        %v563 = vpop.permute.xlu0 %562
        %564 = vrot.lane.b32.xlu0 %v559, 1
        %v565 = vpop.permute.xlu0 %564
        %vm568 = vcmask 15368
        %569 = vst.msk [vmem:[%s12] sm:$0xff] %vm568, %v563
        %570 = vst.msk [vmem:[%s12 + $0x8] sm:$0xff] %vm568, %v565
      $region80: #{tpu_custom_call.1} parent=67 // pred_fallthru
        _
      %p571 = scmp.eq.s32.totalorder %s30, 1
      // Predicated region
      $region81: #{tpu_custom_call.1} parent=67 // pred_check
        %p572 = pneg %p571
      $region82: #{tpu_custom_call.1} parent=67 // pred_check_branch
        %574 = sbr.rel (%p572) target = $region84
      $region83: #{tpu_custom_call.1} parent=67 // pred_region
        %v575 = vld [vmem:[%s12] sm:$0xff]
        %v576 = vld [vmem:[%s12 + $0x8] sm:$0xff]
        %578 = vset.pattern.permute.xlu0 0
        %579 = vperm.xlu0 %578, %v575
        %v580 = vpop.permute.xlu0 %579
        %583 = vset.pattern.permute.xlu0 0
        %584 = vperm.xlu0 %583, %v576
        %v585 = vpop.permute.xlu0 %584
        %v587 = vmul.f32 %v476, %v580
        %v588 = vmul.f32 %v477, %v585
        %589 = vset.pattern.permute.xlu0 1
        %590 = vperm.xlu0 %589, %v575
        %v591 = vpop.permute.xlu0 %590
        %593 = vset.pattern.permute.xlu0 1
        %594 = vperm.xlu0 %593, %v576
        %v595 = vpop.permute.xlu0 %594
        %v597 = vadd.f32 %v587, %v591
        %v598 = vadd.f32 %v588, %v595
        %v599 = vmax.f32 %v597, 0.0
        %v600 = vmax.f32 %v598, 0.0
        %v601 = vld [vmem:[%s4] sm:$0xf]
        %v602 = vpack.c.bf16 %v601, %v601
        %v603 = vpack.c.bf16 %v600, %v599
        %v604 = vld [vmem:[%s5] sm:$0xf]
        %606 = vset.pattern.permute.xlu0 0
        %607 = vperm.xlu0 %606, %v604
        %v608 = vpop.permute.xlu0 %607
        %vm610 = vcmask 130048
        %v612 = vsel %vm610, %v602, 0
        %614 = vmatprep.subr.bf16.mxu0 0
        %615 = vmatpush1.bf16.msra.mxu0 0
        %616 = vmatprep.subr.bf16.mxu0 0
        %617 = vmatpush1.bf16.msra.mxu0 0
        %618 = vmatprep.subr.bf16.mxu0 0
        %619 = vmatpush1.bf16.msra.mxu0 0
        %620 = vmatprep.subr.bf16.mxu0 0
        %621 = vmatpush1.bf16.msra.mxu0 0
        %622 = vmatprep.subr.bf16.mxu0 0
        %623 = vmatpush1.bf16.msra.mxu0 0
        %624 = vmatprep.subr.bf16.mxu0 0
        %625 = vmatpush1.bf16.msra.mxu0 0
        %626 = vmatprep.subr.bf16.mxu0 0
        %627 = vmatpush1.bf16.msra.mxu0 0
        %628 = vmatprep.subr.bf16.mxu0 0
        %629 = vmatpush1.bf16.msra.mxu0 %v603
        %630 = vmatprep.subr.bf16.mxu0 0
        %631 = vmatpush2.bf16.msra.mxu0 0
        %632 = vmatprep.subr.bf16.mxu0 0
        %633 = vmatpush2.bf16.msra.mxu0 0
        %634 = vmatprep.subr.bf16.mxu0 0
        %635 = vmatpush2.bf16.msra.mxu0 0
        %636 = vmatprep.subr.bf16.mxu0 0
        %637 = vmatpush2.bf16.msra.mxu0 0
        %638 = vmatprep.subr.bf16.mxu0 0
        %639 = vmatpush2.bf16.msra.mxu0 0
        %640 = vmatprep.subr.bf16.mxu0 0
        %641 = vmatpush2.bf16.msra.mxu0 0
        %642 = vmatprep.subr.bf16.mxu0 0
        %643 = vmatpush2.bf16.msra.mxu0 0
        %644 = vmatprep.subr.bf16.mxu0 0
        %645 = vmatpush2.bf16.msra.mxu0 0
        %646 = vmatprep.mubr.bf16.mxu0 0
        %647 = vmatmul.mubr.bf16.gmra.mxu0 %v612
        %v648 = vpop.f32.mrf.mxu0
        %v649 = vadd.f32 %v608, %v648
        %v650 = vpop.f32.mrf.mxu0
        %v651 = vpop.f32.mrf.mxu0
        %v652 = vpop.f32.mrf.mxu0
        %653 = vdwg.mxu0
        %v654 = vld [vmem:[#allocation3] sm:$0xf]
        %vm655 = vcmask 1043456
        %v656 = vsel %vm655, %v649, 0.0
        %657 = vadd.xlane.f32.xlu0 %v656
        %v658 = vpop.xlane.xlu0 %657
        %v659 = vadd.f32 %v654, %v658
        %vm660 = vcmask 3072
        %661 = vst.msk [vmem:[#allocation3] sm:$0xf] %vm660, %v659
        %v662 = vld [vmem:[#allocation3] sm:$0xf]
        %v663 = vmul.f32 %v649, %v649
        %v664 = vsel %vm655, %v663, 0.0
        %665 = vadd.xlane.f32.xlu0 %v664
        %v666 = vpop.xlane.xlu0 %665
        %v667 = vadd.f32 %v662, %v666
        %vm668 = vcmask 11272
        %669 = vst.msk [vmem:[#allocation3] sm:$0xf] %vm668, %v667
      $region84: #{tpu_custom_call.1} parent=67 // pred_fallthru
        _
      %p670 = pnand %p571, %p475
      %p671 = pneg %p670
      // Predicated region
      $region85: #{tpu_custom_call.1} parent=67 // pred_check
        _
      $region86: #{tpu_custom_call.1} parent=67 // pred_check_branch
        %673 = sbr.rel (%p670) target = $region88
      $region87: #{tpu_custom_call.1} parent=67 // pred_region
        %v674 = vld [vmem:[#allocation3] sm:$0xf]
        %v675 = vmul.f32 %v674, 0.00390625
        %v676 = vmul.f32 %v675, %v675
        %678 = vrot.lane.b32.xlu0 %v676, 1
        %v679 = vpop.permute.xlu0 %678
        %v681 = vsub.f32 %v675, %v679
        %v682 = vld [vmem:[%s6] sm:$0xf]
        %v683 = vadd.f32 %v681, 1e-05
        %v684 = vrsqrt.pop %v683
        %686 = vrot.lane.b32.xlu0 %v684, 127
        %v687 = vpop.permute.xlu0 %686
        %v689 = vmul.f32 %v682, %v687
        %vm690 = vcmask 3072
        %691 = vst.msk [vmem:[%s13] sm:$0xf] %vm690, %v689
        %v692 = vld [vmem:[%s7] sm:$0xf]
        %v693 = vmul.f32 %v675, %v689
        %v694 = vsub.f32 %v692, %v693
        %696 = vrot.lane.b32.xlu0 %v694, 1
        %v697 = vpop.permute.xlu0 %696
        %vm699 = vcmask 11272
        %700 = vst.msk [vmem:[%s13] sm:$0xf] %vm699, %v697
      $region88: #{tpu_custom_call.1} parent=67 // pred_fallthru
        _
      %p701 = scmp.eq.s32.totalorder %s30, 2
      // Predicated region
      $region89: #{tpu_custom_call.1} parent=67 // pred_check
        %p702 = pneg %p701
      $region90: #{tpu_custom_call.1} parent=67 // pred_check_branch
        %704 = sbr.rel (%p702) target = $region92
      $region91: #{tpu_custom_call.1} parent=67 // pred_region
        %v705 = vld [vmem:[%s12] sm:$0xff]
        %v706 = vld [vmem:[%s12 + $0x8] sm:$0xff]
        %708 = vset.pattern.permute.xlu0 0
        %709 = vperm.xlu0 %708, %v705
        %v710 = vpop.permute.xlu0 %709
        %713 = vset.pattern.permute.xlu0 0
        %714 = vperm.xlu0 %713, %v706
        %v715 = vpop.permute.xlu0 %714
        %v717 = vmul.f32 %v476, %v710
        %v718 = vmul.f32 %v477, %v715
        %719 = vset.pattern.permute.xlu0 1
        %720 = vperm.xlu0 %719, %v705
        %v721 = vpop.permute.xlu0 %720
        %723 = vset.pattern.permute.xlu0 1
        %724 = vperm.xlu0 %723, %v706
        %v725 = vpop.permute.xlu0 %724
        %v727 = vadd.f32 %v717, %v721
        %v728 = vadd.f32 %v718, %v725
        %v729 = vmax.f32 %v727, 0.0
        %v730 = vmax.f32 %v728, 0.0
        %v731 = vld [vmem:[%s4] sm:$0xf]
        %v732 = vpack.c.bf16 %v731, %v731
        %v733 = vpack.c.bf16 %v730, %v729
        %v734 = vld [vmem:[%s5] sm:$0xf]
        %736 = vset.pattern.permute.xlu0 0
        %737 = vperm.xlu0 %736, %v734
        %v738 = vpop.permute.xlu0 %737
        %vm740 = vcmask 130048
        %v742 = vsel %vm740, %v732, 0
        %744 = vmatprep.subr.bf16.mxu0 0
        %745 = vmatpush1.bf16.msra.mxu0 0
        %746 = vmatprep.subr.bf16.mxu0 0
        %747 = vmatpush1.bf16.msra.mxu0 0
        %748 = vmatprep.subr.bf16.mxu0 0
        %749 = vmatpush1.bf16.msra.mxu0 0
        %750 = vmatprep.subr.bf16.mxu0 0
        %751 = vmatpush1.bf16.msra.mxu0 0
        %752 = vmatprep.subr.bf16.mxu0 0
        %753 = vmatpush1.bf16.msra.mxu0 0
        %754 = vmatprep.subr.bf16.mxu0 0
        %755 = vmatpush1.bf16.msra.mxu0 0
        %756 = vmatprep.subr.bf16.mxu0 0
        %757 = vmatpush1.bf16.msra.mxu0 0
        %758 = vmatprep.subr.bf16.mxu0 0
        %759 = vmatpush1.bf16.msra.mxu0 %v733
        %760 = vmatprep.subr.bf16.mxu0 0
        %761 = vmatpush2.bf16.msra.mxu0 0
        %762 = vmatprep.subr.bf16.mxu0 0
        %763 = vmatpush2.bf16.msra.mxu0 0
        %764 = vmatprep.subr.bf16.mxu0 0
        %765 = vmatpush2.bf16.msra.mxu0 0
        %766 = vmatprep.subr.bf16.mxu0 0
        %767 = vmatpush2.bf16.msra.mxu0 0
        %768 = vmatprep.subr.bf16.mxu0 0
        %769 = vmatpush2.bf16.msra.mxu0 0
        %770 = vmatprep.subr.bf16.mxu0 0
        %771 = vmatpush2.bf16.msra.mxu0 0
        %772 = vmatprep.subr.bf16.mxu0 0
        %773 = vmatpush2.bf16.msra.mxu0 0
        %774 = vmatprep.subr.bf16.mxu0 0
        %775 = vmatpush2.bf16.msra.mxu0 0
        %776 = vmatprep.mubr.bf16.mxu0 0
        %777 = vmatmul.mubr.bf16.gmra.mxu0 %v742
        %v778 = vpop.f32.mrf.mxu0
        %v779 = vadd.f32 %v738, %v778
        %v780 = vpop.f32.mrf.mxu0
        %v781 = vpop.f32.mrf.mxu0
        %v782 = vpop.f32.mrf.mxu0
        %783 = vdwg.mxu0
        %v784 = vld [vmem:[%s13] sm:$0xf]
        %786 = vset.pattern.permute.xlu0 0
        %787 = vperm.xlu0 %786, %v784
        %v788 = vpop.permute.xlu0 %787
        %v790 = vmul.f32 %v779, %v788
        %791 = vset.pattern.permute.xlu0 1
        %792 = vperm.xlu0 %791, %v784
        %v793 = vpop.permute.xlu0 %792
        %v795 = vadd.f32 %v790, %v793
        %v796 = vmax.f32 %v795, 0.0
        %v797 = vld [vmem:[%s8] sm:$0xf]
        %v798 = vld [vmem:[%s9] sm:$0xf]
        %v799 = vlaneseq
        %v800 = vand.u32 %v799, 127
        %vm801 = vcmp.eq.s32.totalorder %v800, 0
        %802 = vrot.lane.b32.xlu0 %v796, 1
        %v803 = vpop.permute.xlu0 %802
        %v804 = vsel %vm801, 0.0, %v803
        %vm805 = vcmp.eq.s32.totalorder %v800, 127
        %806 = vrot.lane.b32.xlu0 %v796, 127
        %v807 = vpop.permute.xlu0 %806
        %v808 = vsel %vm805, 0.0, %v807
        %v810 = vrot.slane %v796, 4
        %vm812 = vcmask 1043456
        %v813 = vsel %vm812, %v804, %v810
        %v814 = vpack.c.bf16 %v797, %v797
        %v815 = vpack.c.bf16 %v808, %v813
        %817 = vset.pattern.permute.xlu0 0
        %818 = vperm.xlu0 %817, %v798
        %v819 = vpop.permute.xlu0 %818
        %vm821 = vcmask 97280
        %v823 = vsel %vm821, %v814, 0
        %vm825 = vcmask 1045504
        %v827 = vsel %vm825, %v815, 0
        %829 = vmatprep.subr.bf16.mxu0 0
        %830 = vmatpush1.bf16.msra.mxu0 0
        %831 = vmatprep.subr.bf16.mxu0 0
        %832 = vmatpush1.bf16.msra.mxu0 0
        %833 = vmatprep.subr.bf16.mxu0 0
        %834 = vmatpush1.bf16.msra.mxu0 0
        %835 = vmatprep.subr.bf16.mxu0 0
        %836 = vmatpush1.bf16.msra.mxu0 0
        %837 = vmatprep.subr.bf16.mxu0 0
        %838 = vmatpush1.bf16.msra.mxu0 0
        %839 = vmatprep.subr.bf16.mxu0 0
        %840 = vmatpush1.bf16.msra.mxu0 0
        %841 = vmatprep.subr.bf16.mxu0 0
        %842 = vmatpush1.bf16.msra.mxu0 0
        %843 = vmatprep.subr.bf16.mxu0 0
        %844 = vmatpush1.bf16.msra.mxu0 %v827
        %845 = vmatprep.subr.bf16.mxu0 0
        %846 = vmatpush2.bf16.msra.mxu0 0
        %847 = vmatprep.subr.bf16.mxu0 0
        %848 = vmatpush2.bf16.msra.mxu0 0
        %849 = vmatprep.subr.bf16.mxu0 0
        %850 = vmatpush2.bf16.msra.mxu0 0
        %851 = vmatprep.subr.bf16.mxu0 0
        %852 = vmatpush2.bf16.msra.mxu0 0
        %853 = vmatprep.subr.bf16.mxu0 0
        %854 = vmatpush2.bf16.msra.mxu0 0
        %855 = vmatprep.subr.bf16.mxu0 0
        %856 = vmatpush2.bf16.msra.mxu0 0
        %857 = vmatprep.subr.bf16.mxu0 0
        %858 = vmatpush2.bf16.msra.mxu0 0
        %859 = vmatprep.subr.bf16.mxu0 0
        %860 = vmatpush2.bf16.msra.mxu0 0
        %861 = vmatprep.mubr.bf16.mxu0 0
        %862 = vmatmul.mubr.bf16.gmra.mxu0 %v823
        %v863 = vpop.f32.mrf.mxu0
        %v864 = vadd.f32 %v819, %v863
        %v865 = vpop.f32.mrf.mxu0
        %v866 = vpop.f32.mrf.mxu0
        %v867 = vpop.f32.mrf.mxu0
        %868 = vdwg.mxu0
        %v869 = vld [vmem:[#allocation3] sm:$0xf]
        %v870 = vsel %vm812, %v864, 0.0
        %871 = vadd.xlane.f32.xlu0 %v870
        %v872 = vpop.xlane.xlu0 %871
        %v873 = vadd.f32 %v869, %v872
        %vm874 = vcmask 3072
        %875 = vst.msk [vmem:[#allocation3] sm:$0xf] %vm874, %v873
        %v876 = vld [vmem:[#allocation3] sm:$0xf]
        %v877 = vmul.f32 %v864, %v864
        %v878 = vsel %vm812, %v877, 0.0
        %879 = vadd.xlane.f32.xlu0 %v878
        %v880 = vpop.xlane.xlu0 %879
        %v881 = vadd.f32 %v876, %v880
        %vm882 = vcmask 11272
        %883 = vst.msk [vmem:[#allocation3] sm:$0xf] %vm882, %v881
      $region92: #{tpu_custom_call.1} parent=67 // pred_fallthru
        _
      %p884 = pnand %p701, %p475
      %p885 = pneg %p884
      // Predicated region
      $region93: #{tpu_custom_call.1} parent=67 // pred_check
        _
      $region94: #{tpu_custom_call.1} parent=67 // pred_check_branch
        %887 = sbr.rel (%p884) target = $region96
      $region95: #{tpu_custom_call.1} parent=67 // pred_region
        %v888 = vld [vmem:[#allocation3] sm:$0xf]
        %v889 = vmul.f32 %v888, 0.00390625
        %v890 = vmul.f32 %v889, %v889
        %892 = vrot.lane.b32.xlu0 %v890, 1
        %v893 = vpop.permute.xlu0 %892
        %v895 = vsub.f32 %v889, %v893
        %v896 = vld [vmem:[%s10] sm:$0xf]
        %v897 = vadd.f32 %v895, 1e-05
        %v898 = vrsqrt.pop %v897
        %900 = vrot.lane.b32.xlu0 %v898, 127
        %v901 = vpop.permute.xlu0 %900
        %v903 = vmul.f32 %v896, %v901
        %vm904 = vcmask 3072
        %905 = vst.msk [vmem:[%s14] sm:$0xf] %vm904, %v903
        %v906 = vld [vmem:[%s11] sm:$0xf]
        %v907 = vmul.f32 %v889, %v903
        %v908 = vsub.f32 %v906, %v907
        %910 = vrot.lane.b32.xlu0 %v908, 1
        %v911 = vpop.permute.xlu0 %910
        %vm913 = vcmask 11272
        %914 = vst.msk [vmem:[%s14] sm:$0xf] %vm913, %v911
      $region96: #{tpu_custom_call.1} parent=67 // pred_fallthru
        _
      // Predicated region
      $region97: #{tpu_custom_call.1} parent=67 // pred_check
        %p915 = pneg %p313
      $region98: #{tpu_custom_call.1} parent=67 // pred_check_branch
        %917 = sbr.rel (%p915) target = $region100
      $region99: #{tpu_custom_call.1} parent=67 // pred_region
        _
      $region100: #{tpu_custom_call.1} parent=67 // pred_fallthru
        _
      // Predicated region
      $region101: #{tpu_custom_call.1} parent=67 // pred_check
        %p918 = pneg %p334
      $region102: #{tpu_custom_call.1} parent=67 // pred_check_branch
        %920 = sbr.rel (%p918) target = $region104
      $region103: #{tpu_custom_call.1} parent=67 // pred_region
        _
      $region104: #{tpu_custom_call.1} parent=67 // pred_fallthru
        _
      // Predicated region
      $region105: #{tpu_custom_call.1} parent=67 // pred_check
        %p921 = pneg %p355
      $region106: #{tpu_custom_call.1} parent=67 // pred_check_branch
        %923 = sbr.rel (%p921) target = $region108
      $region107: #{tpu_custom_call.1} parent=67 // pred_region
        _
      $region108: #{tpu_custom_call.1} parent=67 // pred_fallthru
        _
      // Predicated region
      $region109: #{tpu_custom_call.1} parent=67 // pred_check
        %p924 = pneg %p313
      $region110: #{tpu_custom_call.1} parent=67 // pred_check_branch
        %926 = sbr.rel (%p924) target = $region112
      $region111: #{tpu_custom_call.1} parent=67 // pred_region
        _
      $region112: #{tpu_custom_call.1} parent=67 // pred_fallthru
        _
      // Predicated region
      $region113: #{tpu_custom_call.1} parent=67 // pred_check
        %p927 = pneg %p334
      $region114: #{tpu_custom_call.1} parent=67 // pred_check_branch
        %929 = sbr.rel (%p927) target = $region116
      $region115: #{tpu_custom_call.1} parent=67 // pred_region
        _
      $region116: #{tpu_custom_call.1} parent=67 // pred_fallthru
        _
      // Predicated region
      $region117: #{tpu_custom_call.1} parent=67 // pred_check
        %p930 = pneg %p355
      $region118: #{tpu_custom_call.1} parent=67 // pred_check_branch
        %932 = sbr.rel (%p930) target = $region120
      $region119: #{tpu_custom_call.1} parent=67 // pred_region
        _
      $region120: #{tpu_custom_call.1} parent=67 // pred_fallthru
        _
    $region68: #{tpu_custom_call.1} parent=5 // pred_fallthru
      _
    %p933 = scmp.le.s32.totalorder 2, %s21
    // Predicated region
    $region121: #{tpu_custom_call.1} parent=5 // pred_check
      %p934 = pneg %p933
    $region122: #{tpu_custom_call.1} parent=5 // pred_check_branch
      %936 = sbr.rel (%p934) target = $region124
    $region123: #{tpu_custom_call.1} parent=5 // pred_region
      %s937 = ssub.s32 %s21, 2
    $region124: #{tpu_custom_call.1} parent=5 // pred_fallthru
      _
  $region6: #{tpu_custom_call.1} parent=0 // loop_footer
    %s25 = sadd.s32 1, %s21
  $region7: #{tpu_custom_call.1} parent=0 // loop_footer_branch
    %20 = sbr.rel target = $region3
  $region8: #{tpu_custom_call.1} parent=0 // loop_exit
    _

</llo_original>
